<compile_context>
chip_gen: v7x
topology: tpu7x:2x2x1
jax: 0.10.0
libtpu: 0.0.40
codegen_flags: <defaults>
</compile_context>

<pallas_src>
import functools

import jax
import jax.numpy as jnp
from jax.experimental import pallas as pl
from jax.experimental.pallas import tpu as pltpu


def _round_up(x, m):
    return (x + m - 1) // m * m


def _cvae_kernel(
    xe_ref, emb_ref, eps_ref,
    w1_ref, b1_ref,
    wmulv_ref, bmulv_ref,
    w3_ref, b3_ref,
    w4_ref, b4_ref,
    recon_ref, mulv_ref,
    zemb_ref,
    *, latent_dim, embed_dim,
):
    f32 = jnp.float32

    # ----- encode: h = relu(fc1([x | emb]))  (single packed matmul) -----
    h = jnp.dot(xe_ref[...], w1_ref[...], preferred_element_type=f32) + b1_ref[...]
    h = jnp.maximum(h, 0.0)

    # ----- fused mu|logvar head -> lane-dense 128-wide slab -----
    mulv = jnp.dot(h, wmulv_ref[...], preferred_element_type=f32) + bmulv_ref[...]
    mulv_ref[...] = mulv

    mu = mulv[:, :latent_dim]
    logvar = mulv[:, latent_dim:2 * latent_dim]

    # ----- reparameterize: z = mu + eps * exp(logvar / 2) -----
    z = mu + eps_ref[...] * jnp.exp(0.5 * logvar)

    # ----- pack [z | emb | 0] into VMEM scratch -> single fc3 matmul -----
    zemb_ref[...] = jnp.zeros_like(zemb_ref)
    zemb_ref[:, :latent_dim] = z
    zemb_ref[:, latent_dim:latent_dim + embed_dim] = emb_ref[...]

    h2 = jnp.dot(zemb_ref[...], w3_ref[...], preferred_element_type=f32) + b3_ref[...]
    h2 = jnp.maximum(h2, 0.0)

    # ----- decode: recon = fc4(h2)  (lane-dense padded output) -----
    recon_ref[...] = (
        jnp.dot(h2, w4_ref[...], preferred_element_type=f32) + b4_ref[...]
    )


@functools.partial(jax.jit, static_argnames=("latent_dim", "image_dim", "tile_m"))
def cvae_forward(x, labels, eps, packed, *, latent_dim, image_dim, tile_m=128):
    """Pallas-backed ConditionalVAE forward.

    x:      (B, image_dim) float32
    labels: (B,) int32
    eps:    (B, latent_dim) float32  (the randn_like draw)
    packed: output of pack_params()
    """
    B = x.shape[0]
    embed = packed["embed"]
    embed_dim = embed.shape[1]
    k1_pad = packed["w1"].shape[0]
    k3_pad = packed["w3"].shape[0]
    mulv_w = packed["wmulv"].shape[1]
    img_pad = packed["w4"].shape[1]

    # Embedding lookup + fc1 input packing as JAX glue.
    emb = jnp.take(embed, labels, axis=0)            # (B, embed_dim)
    xe = jnp.concatenate([x, emb], axis=1)           # (B, image_dim + embed_dim)

    b_pad = _round_up(B, tile_m)

    def pad2(a, rows, cols):
        return jnp.pad(a, ((0, rows - a.shape[0]), (0, cols - a.shape[1])))

    xe_p = pad2(xe, b_pad, k1_pad)
    emb_p = pad2(emb, b_pad, embed_dim)
    eps_p = pad2(eps, b_pad, latent_dim)

    grid = (b_pad // tile_m,)

    def row_spec(cols):
        return pl.BlockSpec((tile_m, cols), lambda i: (i, 0))

    def full_spec(a):
        # Constant block index -> weight stays resident in VMEM across steps.
        return pl.BlockSpec(a.shape, lambda i: (0, 0))

    kernel = functools.partial(
        _cvae_kernel, latent_dim=latent_dim, embed_dim=embed_dim)

    recon_p, mulv = pl.pallas_call(
        kernel,
        grid=grid,
        in_specs=[
            row_spec(k1_pad),          # xe
            row_spec(embed_dim),       # emb
            row_spec(latent_dim),      # eps
            full_spec(packed["w1"]), full_spec(packed["b1"]),
            full_spec(packed["wmulv"]), full_spec(packed["bmulv"]),
            full_spec(packed["w3"]), full_spec(packed["b3"]),
            full_spec(packed["w4"]), full_spec(packed["b4"]),
        ],
        out_specs=(
            pl.BlockSpec((tile_m, img_pad), lambda i: (i, 0)),
            pl.BlockSpec((tile_m, mulv_w), lambda i: (i, 0)),
        ),
        out_shape=(
            jax.ShapeDtypeStruct((b_pad, img_pad), jnp.float32),
            jax.ShapeDtypeStruct((b_pad, mulv_w), jnp.float32),
        ),
        scratch_shapes=[pltpu.VMEM((tile_m, k3_pad), jnp.float32)],
        compiler_params=pltpu.CompilerParams(
            dimension_semantics=("parallel",),
            vmem_limit_bytes=32 * 1024 * 1024,
        ),
    )(xe_p, emb_p, eps_p,
      packed["w1"], packed["b1"],
      packed["wmulv"], packed["bmulv"],
      packed["w3"], packed["b3"],
      packed["w4"], packed["b4"])

    recon = recon_p[:B, :image_dim]
    mu = mulv[:B, :latent_dim]
    logvar = mulv[:B, latent_dim:2 * latent_dim]
    return recon, mu, logvar


def init_params(key, latent_dim, num_classes, image_dim, embed_dim=50, hidden=512):
    """Synthetic params; Linear weights stored transposed vs torch: (in, out)."""
    ks = jax.random.split(key, 7)

    def lin(k, fan_in, fan_out):
        bound = 1.0 / jnp.sqrt(fan_in)
        kw, kb = jax.random.split(k)
        w = jax.random.uniform(kw, (fan_in, fan_out), jnp.float32, -bound, bound)
        b = jax.random.uniform(kb, (1, fan_out), jnp.float32, -bound, bound)
        return w, b

    embed = jax.random.normal(ks[0], (num_classes, embed_dim), jnp.float32)
    w1, b1 = lin(ks[1], image_dim + embed_dim, hidden)        # fc1
    wmu, bmu = lin(ks[2], hidden, latent_dim)                  # fc2_mu
    wlv, blv = lin(ks[3], hidden, latent_dim)                  # fc2_logvar
    w3, b3 = lin(ks[4], latent_dim + embed_dim, hidden)        # fc3
    w4, b4 = lin(ks[5], hidden, image_dim)                     # fc4
    return dict(embed=embed, w1=w1, b1=b1, wmu=wmu, bmu=bmu,
                wlv=wlv, blv=blv, w3=w3, b3=b3, w4=w4, b4=b4)


def pack_params(p, *, latent_dim, image_dim, embed_dim=50):
    """Pad/pack weights once so every kernel matmul is MXU-aligned."""
    hidden = p["w1"].shape[1]
    k1_pad = _round_up(image_dim + embed_dim, 128)
    k3_pad = _round_up(latent_dim + embed_dim, 128)
    mulv_w = _round_up(2 * latent_dim, 128)
    img_pad = _round_up(image_dim, 128)

    def padw(w, rows, cols):
        return jnp.pad(w, ((0, rows - w.shape[0]), (0, cols - w.shape[1])))

    wmulv = jnp.concatenate([p["wmu"], p["wlv"]], axis=1)   # (hidden, 2*latent)
    bmulv = jnp.concatenate([p["bmu"], p["blv"]], axis=1)   # (1, 2*latent)

    return dict(
        embed=p["embed"],
        w1=padw(p["w1"], k1_pad, hidden), b1=p["b1"],
        wmulv=padw(wmulv, hidden, mulv_w), bmulv=padw(bmulv, 1, mulv_w),
        w3=padw(p["w3"], k3_pad, hidden), b3=p["b3"],
        w4=padw(p["w4"], hidden, img_pad), b4=padw(p["b4"], 1, img_pad),
    )


def cvae_forward_ref(x, labels, eps, p):
    """Pure-JAX reference (mirrors the torch module; no sigmoid on fc4)."""
    emb = jnp.take(p["embed"], labels, axis=0)
    h = jax.nn.relu(jnp.concatenate([x, emb], axis=1) @ p["w1"] + p["b1"])
    mu = h @ p["wmu"] + p["bmu"]
    logvar = h @ p["wlv"] + p["blv"]
    z = mu + eps * jnp.exp(0.5 * logvar)
    h2 = jax.nn.relu(jnp.concatenate([z, emb], axis=1) @ p["w3"] + p["b3"])
    recon = h2 @ p["w4"] + p["b4"]
    return recon, mu, logvar


if __name__ == "__main__":
    B = 8
    latent_dim = 16
    num_classes = 10
    image_dim = 64

    key = jax.random.PRNGKey(0)
    k_param, k_x, k_lbl, k_eps = jax.random.split(key, 4)

    params = init_params(k_param, latent_dim, num_classes, image_dim)
    packed = pack_params(params, latent_dim=latent_dim, image_dim=image_dim)

    x = jax.random.normal(k_x, (B, image_dim), jnp.float32)
    labels = jax.random.randint(k_lbl, (B,), 0, num_classes, jnp.int32)
    eps = jax.random.normal(k_eps, (B, latent_dim), jnp.float32)  # randn_like(std)

    recon, mu, logvar = cvae_forward(
        x, labels, eps, packed, latent_dim=latent_dim, image_dim=image_dim)
    jax.block_until_ready((recon, mu, logvar))

    recon_r, mu_r, logvar_r = cvae_forward_ref(x, labels, eps, params)
    assert jnp.allclose(recon, recon_r, atol=1e-4, rtol=1e-4)
    assert jnp.allclose(mu, mu_r, atol=1e-4, rtol=1e-4)
    assert jnp.allclose(logvar, logvar_r, atol=1e-4, rtol=1e-4)

    print("KERNEL_OK")
</pallas_src>

<mosaic_0001>
module attributes {stable_mosaic.version = 11 : i64} {
  func.func @_cvae_kernel(%arg0: i32, %arg1: memref<128x128xf32, #tpu.memory_space<vmem>>, %arg2: memref<128x50xf32, #tpu.memory_space<vmem>>, %arg3: memref<128x16xf32, #tpu.memory_space<vmem>>, %arg4: memref<128x512xf32, #tpu.memory_space<vmem>>, %arg5: memref<1x512xf32, #tpu.memory_space<vmem>>, %arg6: memref<512x128xf32, #tpu.memory_space<vmem>>, %arg7: memref<1x128xf32, #tpu.memory_space<vmem>>, %arg8: memref<128x512xf32, #tpu.memory_space<vmem>>, %arg9: memref<1x512xf32, #tpu.memory_space<vmem>>, %arg10: memref<512x128xf32, #tpu.memory_space<vmem>>, %arg11: memref<1x128xf32, #tpu.memory_space<vmem>>, %arg12: memref<128x128xf32, #tpu.memory_space<vmem>>, %arg13: memref<128x128xf32, #tpu.memory_space<vmem>>, %arg14: memref<128x128xf32, #tpu.memory_space<vmem>>) attributes {dimension_semantics = [#tpu.dimension_semantics<parallel>], iteration_bounds = array<i64: 1>, scalar_prefetch = 0 : i64, scratch_operands = 1 : i64, tpu.core_type = #tpu.core_type<tc>, window_params = [{transform_indices = @transform_0, window_bounds = array<i64: 128, 128>}, {transform_indices = @transform_1, window_bounds = array<i64: 128, 50>}, {transform_indices = @transform_2, window_bounds = array<i64: 128, 16>}, {pipeline_mode = #tpu.pipeline_mode<synchronous>, transform_indices = @transform_3, window_bounds = array<i64: 128, 512>}, {pipeline_mode = #tpu.pipeline_mode<synchronous>, transform_indices = @transform_4, window_bounds = array<i64: 1, 512>}, {pipeline_mode = #tpu.pipeline_mode<synchronous>, transform_indices = @transform_5, window_bounds = array<i64: 512, 128>}, {pipeline_mode = #tpu.pipeline_mode<synchronous>, transform_indices = @transform_6, window_bounds = array<i64: 1, 128>}, {pipeline_mode = #tpu.pipeline_mode<synchronous>, transform_indices = @transform_7, window_bounds = array<i64: 128, 512>}, {pipeline_mode = #tpu.pipeline_mode<synchronous>, transform_indices = @transform_8, window_bounds = array<i64: 1, 512>}, {pipeline_mode = #tpu.pipeline_mode<synchronous>, transform_indices = @transform_9, window_bounds = array<i64: 512, 128>}, {pipeline_mode = #tpu.pipeline_mode<synchronous>, transform_indices = @transform_10, window_bounds = array<i64: 1, 128>}, {transform_indices = @transform_11, window_bounds = array<i64: 128, 128>}, {transform_indices = @transform_12, window_bounds = array<i64: 128, 128>}]} {
    %c0 = arith.constant 0 : index
    %c0_0 = arith.constant 0 : index
    %0 = vector.load %arg1[%c0, %c0_0] : memref<128x128xf32, #tpu.memory_space<vmem>>, vector<128x128xf32>
    %c0_1 = arith.constant 0 : index
    %c0_2 = arith.constant 0 : index
    %1 = vector.load %arg4[%c0_1, %c0_2] : memref<128x512xf32, #tpu.memory_space<vmem>>, vector<128x512xf32>
    %cst = arith.constant dense<0.000000e+00> : vector<128x512xf32>
    %2 = tpu.matmul %0, %1, %cst {dimension_numbers = #tpu.dot_dimension_numbers<[1], [0], [0], [1], [0, 0, 1, 1], [], []>} : vector<128x128xf32>, vector<128x512xf32>, vector<128x512xf32> -> vector<128x512xf32>
    %c0_3 = arith.constant 0 : index
    %c0_4 = arith.constant 0 : index
    %3 = vector.load %arg5[%c0_3, %c0_4] : memref<1x512xf32, #tpu.memory_space<vmem>>, vector<1x512xf32>
    %4 = vector.broadcast %3 : vector<1x512xf32> to vector<128x512xf32>
    %5 = arith.addf %2, %4 : vector<128x512xf32>
    %cst_5 = arith.constant 0.000000e+00 : f32
    %6 = vector.broadcast %cst_5 : f32 to vector<128x512xf32>
    %7 = arith.maximumf %5, %6 : vector<128x512xf32>
    %c0_6 = arith.constant 0 : index
    %c0_7 = arith.constant 0 : index
    %8 = vector.load %arg6[%c0_6, %c0_7] : memref<512x128xf32, #tpu.memory_space<vmem>>, vector<512x128xf32>
    %cst_8 = arith.constant dense<0.000000e+00> : vector<128x128xf32>
    %9 = tpu.matmul %7, %8, %cst_8 {dimension_numbers = #tpu.dot_dimension_numbers<[1], [0], [0], [1], [0, 0, 1, 1], [], []>} : vector<128x512xf32>, vector<512x128xf32>, vector<128x128xf32> -> vector<128x128xf32>
    %c0_9 = arith.constant 0 : index
    %c0_10 = arith.constant 0 : index
    %10 = vector.load %arg7[%c0_9, %c0_10] : memref<1x128xf32, #tpu.memory_space<vmem>>, vector<1x128xf32>
    %11 = vector.broadcast %10 : vector<1x128xf32> to vector<128x128xf32>
    %12 = arith.addf %9, %11 : vector<128x128xf32>
    %c0_11 = arith.constant 0 : index
    %c0_12 = arith.constant 0 : index
    %13 = vector.load %arg13[%c0_11, %c0_12] : memref<128x128xf32, #tpu.memory_space<vmem>>, vector<128x128xf32>
    tpu.vector_store %arg13[%c0_11, %c0_12], %12 {strides = array<i32>} : memref<128x128xf32, #tpu.memory_space<vmem>>, vector<128x128xf32>,
    %14 = vector.extract_strided_slice %12 {offsets = [0, 0], sizes = [128, 16], strides = [1, 1]} : vector<128x128xf32> to vector<128x16xf32>
    %15 = vector.extract_strided_slice %12 {offsets = [0, 16], sizes = [128, 16], strides = [1, 1]} : vector<128x128xf32> to vector<128x16xf32>
    %c0_13 = arith.constant 0 : index
    %c0_14 = arith.constant 0 : index
    %16 = vector.load %arg3[%c0_13, %c0_14] : memref<128x16xf32, #tpu.memory_space<vmem>>, vector<128x16xf32>
    %cst_15 = arith.constant 5.000000e-01 : f32
    %17 = vector.broadcast %cst_15 : f32 to vector<128x16xf32>
    %18 = arith.mulf %17, %15 : vector<128x16xf32>
    %19 = math.exp %18 : vector<128x16xf32>
    %20 = arith.mulf %16, %19 : vector<128x16xf32>
    %21 = arith.addf %14, %20 : vector<128x16xf32>
    %cst_16 = arith.constant 0.000000e+00 : f32
    %22 = vector.broadcast %cst_16 : f32 to vector<128x128xf32>
    %c0_17 = arith.constant 0 : index
    %c0_18 = arith.constant 0 : index
    %23 = vector.load %arg14[%c0_17, %c0_18] : memref<128x128xf32, #tpu.memory_space<vmem>>, vector<128x128xf32>
    tpu.vector_store %arg14[%c0_17, %c0_18], %22 {strides = array<i32>} : memref<128x128xf32, #tpu.memory_space<vmem>>, vector<128x128xf32>,
    %c0_19 = arith.constant 0 : index
    %c0_20 = arith.constant 0 : index
    %24 = vector.load %arg14[%c0_19, %c0_20] : memref<128x128xf32, #tpu.memory_space<vmem>>, vector<128x16xf32>
    tpu.vector_store %arg14[%c0_19, %c0_20], %21 {strides = array<i32>} : memref<128x128xf32, #tpu.memory_space<vmem>>, vector<128x16xf32>,
    %c0_21 = arith.constant 0 : index
    %c0_22 = arith.constant 0 : index
    %25 = vector.load %arg2[%c0_21, %c0_22] : memref<128x50xf32, #tpu.memory_space<vmem>>, vector<128x50xf32>
    %c0_23 = arith.constant 0 : index
    %c16 = arith.constant 16 : index
    %26 = vector.load %arg14[%c0_23, %c16] : memref<128x128xf32, #tpu.memory_space<vmem>>, vector<128x50xf32>
    tpu.vector_store %arg14[%c0_23, %c16], %25 {strides = array<i32>} : memref<128x128xf32, #tpu.memory_space<vmem>>, vector<128x50xf32>,
    %c0_24 = arith.constant 0 : index
    %c0_25 = arith.constant 0 : index
    %27 = vector.load %arg14[%c0_24, %c0_25] : memref<128x128xf32, #tpu.memory_space<vmem>>, vector<128x128xf32>
    %c0_26 = arith.constant 0 : index
    %c0_27 = arith.constant 0 : index
    %28 = vector.load %arg8[%c0_26, %c0_27] : memref<128x512xf32, #tpu.memory_space<vmem>>, vector<128x512xf32>
    %cst_28 = arith.constant dense<0.000000e+00> : vector<128x512xf32>
    %29 = tpu.matmul %27, %28, %cst_28 {dimension_numbers = #tpu.dot_dimension_numbers<[1], [0], [0], [1], [0, 0, 1, 1], [], []>} : vector<128x128xf32>, vector<128x512xf32>, vector<128x512xf32> -> vector<128x512xf32>
    %c0_29 = arith.constant 0 : index
    %c0_30 = arith.constant 0 : index
    %30 = vector.load %arg9[%c0_29, %c0_30] : memref<1x512xf32, #tpu.memory_space<vmem>>, vector<1x512xf32>
    %31 = vector.broadcast %30 : vector<1x512xf32> to vector<128x512xf32>
    %32 = arith.addf %29, %31 : vector<128x512xf32>
    %cst_31 = arith.constant 0.000000e+00 : f32
    %33 = vector.broadcast %cst_31 : f32 to vector<128x512xf32>
    %34 = arith.maximumf %32, %33 : vector<128x512xf32>
    %c0_32 = arith.constant 0 : index
    %c0_33 = arith.constant 0 : index
    %35 = vector.load %arg10[%c0_32, %c0_33] : memref<512x128xf32, #tpu.memory_space<vmem>>, vector<512x128xf32>
    %cst_34 = arith.constant dense<0.000000e+00> : vector<128x128xf32>
    %36 = tpu.matmul %34, %35, %cst_34 {dimension_numbers = #tpu.dot_dimension_numbers<[1], [0], [0], [1], [0, 0, 1, 1], [], []>} : vector<128x512xf32>, vector<512x128xf32>, vector<128x128xf32> -> vector<128x128xf32>
    %c0_35 = arith.constant 0 : index
    %c0_36 = arith.constant 0 : index
    %37 = vector.load %arg11[%c0_35, %c0_36] : memref<1x128xf32, #tpu.memory_space<vmem>>, vector<1x128xf32>
    %38 = vector.broadcast %37 : vector<1x128xf32> to vector<128x128xf32>
    %39 = arith.addf %36, %38 : vector<128x128xf32>
    %c0_37 = arith.constant 0 : index
    %c0_38 = arith.constant 0 : index
    %40 = vector.load %arg12[%c0_37, %c0_38] : memref<128x128xf32, #tpu.memory_space<vmem>>, vector<128x128xf32>
    tpu.vector_store %arg12[%c0_37, %c0_38], %39 {strides = array<i32>} : memref<128x128xf32, #tpu.memory_space<vmem>>, vector<128x128xf32>,
    return
  }
  func.func @transform_0(%arg0: i32) -> (i32, i32) {
    %c0_i32 = arith.constant 0 : i32
    %c0_i32_0 = arith.constant 0 : i32
    return %arg0, %c0_i32 : i32, i32
  }
  func.func @transform_1(%arg0: i32) -> (i32, i32) {
    %c0_i32 = arith.constant 0 : i32
    %c0_i32_0 = arith.constant 0 : i32
    return %arg0, %c0_i32 : i32, i32
  }
  func.func @transform_2(%arg0: i32) -> (i32, i32) {
    %c0_i32 = arith.constant 0 : i32
    %c0_i32_0 = arith.constant 0 : i32
    return %arg0, %c0_i32 : i32, i32
  }
  func.func @transform_3(%arg0: i32) -> (i32, i32) {
    %c0_i32 = arith.constant 0 : i32
    %c0_i32_0 = arith.constant 0 : i32
    %c0_i32_1 = arith.constant 0 : i32
    return %c0_i32, %c0_i32_0 : i32, i32
  }
  func.func @transform_4(%arg0: i32) -> (i32, i32) {
    %c0_i32 = arith.constant 0 : i32
    %c0_i32_0 = arith.constant 0 : i32
    %c0_i32_1 = arith.constant 0 : i32
    return %c0_i32, %c0_i32_0 : i32, i32
  }
  func.func @transform_5(%arg0: i32) -> (i32, i32) {
    %c0_i32 = arith.constant 0 : i32
    %c0_i32_0 = arith.constant 0 : i32
    %c0_i32_1 = arith.constant 0 : i32
    return %c0_i32, %c0_i32_0 : i32, i32
  }
  func.func @transform_6(%arg0: i32) -> (i32, i32) {
    %c0_i32 = arith.constant 0 : i32
    %c0_i32_0 = arith.constant 0 : i32
    %c0_i32_1 = arith.constant 0 : i32
    return %c0_i32, %c0_i32_0 : i32, i32
  }
  func.func @transform_7(%arg0: i32) -> (i32, i32) {
    %c0_i32 = arith.constant 0 : i32
    %c0_i32_0 = arith.constant 0 : i32
    %c0_i32_1 = arith.constant 0 : i32
    return %c0_i32, %c0_i32_0 : i32, i32
  }
  func.func @transform_8(%arg0: i32) -> (i32, i32) {
    %c0_i32 = arith.constant 0 : i32
    %c0_i32_0 = arith.constant 0 : i32
    %c0_i32_1 = arith.constant 0 : i32
    return %c0_i32, %c0_i32_0 : i32, i32
  }
  func.func @transform_9(%arg0: i32) -> (i32, i32) {
    %c0_i32 = arith.constant 0 : i32
    %c0_i32_0 = arith.constant 0 : i32
    %c0_i32_1 = arith.constant 0 : i32
    return %c0_i32, %c0_i32_0 : i32, i32
  }
  func.func @transform_10(%arg0: i32) -> (i32, i32) {
    %c0_i32 = arith.constant 0 : i32
    %c0_i32_0 = arith.constant 0 : i32
    %c0_i32_1 = arith.constant 0 : i32
    return %c0_i32, %c0_i32_0 : i32, i32
  }
  func.func @transform_11(%arg0: i32) -> (i32, i32) {
    %c0_i32 = arith.constant 0 : i32
    %c0_i32_0 = arith.constant 0 : i32
    return %arg0, %c0_i32 : i32, i32
  }
  func.func @transform_12(%arg0: i32) -> (i32, i32) {
    %c0_i32 = arith.constant 0 : i32
    %c0_i32_0 = arith.constant 0 : i32
    return %arg0, %c0_i32 : i32, i32
  }
}

</mosaic_0001>

<llo_original>
// kernel: cvae_forward.1
$region0: #{cvae_forward.1}
  #allocation0 [shape = 'u32[]', space=smem, size = 0x4, offset = 0x4, fixed_abs, tag = 'smem constant byte address 0x4 - core index']
  #allocation1 [shape = 'u32[144,128]{1,0:T(1,128)}', space=vmem, size = 0x12000, scoped, tag = 'internal scratch']
  #allocation2 [shape = 'f32[128,128]{1,0:T(8,128)}', space=vmem, size = 0x10000, scoped, tag = 'scratch operand']
  %s0 = inlined_call_operand.vmem [shape: f32[128,128], index: 0, kind: input, shape index: {}]
  %s1 = inlined_call_operand.vmem [shape: f32[128,50], index: 1, kind: input, shape index: {}]
  %s2 = inlined_call_operand.vmem [shape: f32[128,16], index: 2, kind: input, shape index: {}]
  %s3 = inlined_call_operand.vmem [shape: f32[128,512], index: 3, kind: input, shape index: {}]
  %s4 = inlined_call_operand.vmem [shape: f32[1,512], index: 4, kind: input, shape index: {}]
  %s5 = inlined_call_operand.hbm [shape: f32[512,128], index: 5, kind: input, shape index: {}]
  %s6 = inlined_call_operand.vmem [shape: f32[1,128], index: 6, kind: input, shape index: {}]
  %s7 = inlined_call_operand.hbm [shape: f32[128,512], index: 7, kind: input, shape index: {}]
  %s8 = inlined_call_operand.vmem [shape: f32[1,512], index: 8, kind: input, shape index: {}]
  %s9 = inlined_call_operand.hbm [shape: f32[512,128], index: 9, kind: input, shape index: {}]
  %s10 = inlined_call_operand.vmem [shape: f32[1,128], index: 10, kind: input, shape index: {}]
  %s11 = inlined_call_operand.vmem [shape: f32[128,128], index: 11, kind: output, shape index: {0}]
  %s12 = inlined_call_operand.vmem [shape: f32[128,128], index: 12, kind: output, shape index: {1}]
  %13 = xla_tuple %s11, %s12
  %s14 = sld [smem:[#allocation0]]
  $region74: #{cvae_forward.1} parent=0
    _
  %s16 = ssub.s32 1, %s14
  %s17 = scalar_select 0, %s16, %s14
  $region1: #{cvae_forward.1} parent=0
    #allocation3 [shape = 'u8[262144]{0}', space=vmem, size = 0x40000, scoped, tag = 'input window, operand 5, single buffered']
    #allocation4 [shape = 's32[1]{0}', space=sflag, size = 0x4, scoped, tag = 'scoped memory for cvae_forward.1']
    #allocation5 [shape = 'u8[262144]{0}', space=vmem, size = 0x40000, scoped, tag = 'input window, operand 7, single buffered']
    #allocation6 [shape = 's32[1]{0}', space=sflag, size = 0x4, scoped, tag = 'scoped memory for cvae_forward.1']
    #allocation7 [shape = 'u8[262144]{0}', space=vmem, size = 0x40000, scoped, tag = 'input window, operand 9, single buffered']
    %18 = vsyncpa [#allocation4], 0
    %19 = vsyncpa [#allocation6], 0
    // Predicated region
    $region2: #{cvae_forward.1} parent=1 // pred_check
      _
    $region3: #{cvae_forward.1} parent=1 // pred_check_branch
      %21 = sbr.rel (0) target = $region5
    $region4: #{cvae_forward.1} parent=1 // pred_region
      _
    $region5: #{cvae_forward.1} parent=1 // pred_fallthru
      _
    // Predicated region
    $region6: #{cvae_forward.1} parent=1 // pred_check
      _
    $region7: #{cvae_forward.1} parent=1 // pred_check_branch
      %23 = sbr.rel (0) target = $region9
    $region8: #{cvae_forward.1} parent=1 // pred_region
      _
    $region9: #{cvae_forward.1} parent=1 // pred_fallthru
      _
    // Predicated region
    $region10: #{cvae_forward.1} parent=1 // pred_check
      _
    $region11: #{cvae_forward.1} parent=1 // pred_check_branch
      %25 = sbr.rel (0) target = $region13
    $region12: #{cvae_forward.1} parent=1 // pred_region
      _
    $region13: #{cvae_forward.1} parent=1 // pred_fallthru
      _
    // Predicated region
    $region14: #{cvae_forward.1} parent=1 // pred_check
      _
    $region15: #{cvae_forward.1} parent=1 // pred_check_branch
      %27 = sbr.rel (0) target = $region17
    $region16: #{cvae_forward.1} parent=1 // pred_region
      _
    $region17: #{cvae_forward.1} parent=1 // pred_fallthru
      _
    // Predicated region
    $region18: #{cvae_forward.1} parent=1 // pred_check
      _
    $region19: #{cvae_forward.1} parent=1 // pred_check_branch
      %29 = sbr.rel (0) target = $region21
    $region20: #{cvae_forward.1} parent=1 // pred_region
      _
    $region21: #{cvae_forward.1} parent=1 // pred_fallthru
      _
    // Predicated region
    $region22: #{cvae_forward.1} parent=1 // pred_check
      _
    $region23: #{cvae_forward.1} parent=1 // pred_check_branch
      %31 = sbr.rel (0) target = $region25
    $region24: #{cvae_forward.1} parent=1 // pred_region
      %s33 = ssub.s32 8192, 8192
      %34 = vsyncadd [#allocation4], %s33
      %s35 = sshll.u32 [#allocation3], 4
      %s36 = int_to_ptr.vmem [resolvable:$true] %s35
      %41 = dma.hbm_to_vmem [thread:$0]  %s5, 8192, %s36, [#allocation4], 128, 128, 8
    $region25: #{cvae_forward.1} parent=1 // pred_fallthru
      _
    // Predicated region
    $region26: #{cvae_forward.1} parent=1 // pred_check
      _
    $region27: #{cvae_forward.1} parent=1 // pred_check_branch
      %43 = sbr.rel (0) target = $region29
    $region28: #{cvae_forward.1} parent=1 // pred_region
      _
    $region29: #{cvae_forward.1} parent=1 // pred_fallthru
      _
    // Predicated region
    $region30: #{cvae_forward.1} parent=1 // pred_check
      _
    $region31: #{cvae_forward.1} parent=1 // pred_check_branch
      %45 = sbr.rel (0) target = $region33
    $region32: #{cvae_forward.1} parent=1 // pred_region
      %s47 = ssub.s32 8192, 8192
      %48 = vsyncadd [#allocation6], %s47
      %s49 = sshll.u32 [#allocation5], 4
      %s50 = int_to_ptr.vmem [resolvable:$true] %s49
      %55 = dma.hbm_to_vmem [thread:$0]  %s7, 8192, %s50, [#allocation6], 512, 512, 32
    $region33: #{cvae_forward.1} parent=1 // pred_fallthru
      _
    // Predicated region
    $region34: #{cvae_forward.1} parent=1 // pred_check
      _
    $region35: #{cvae_forward.1} parent=1 // pred_check_branch
      %57 = sbr.rel (0) target = $region37
    $region36: #{cvae_forward.1} parent=1 // pred_region
      _
    $region37: #{cvae_forward.1} parent=1 // pred_fallthru
      _
    // Predicated region
    $region38: #{cvae_forward.1} parent=1 // pred_check
      _
    $region39: #{cvae_forward.1} parent=1 // pred_check_branch
      %59 = sbr.rel (0) target = $region41
    $region40: #{cvae_forward.1} parent=1 // pred_region
      %s61 = ssub.s32 8192, 8192
      %62 = vsyncadd [#allocation6], %s61
      %s63 = sshll.u32 [#allocation7], 4
      %s64 = int_to_ptr.vmem [resolvable:$true] %s63
      %69 = dma.hbm_to_vmem [thread:$0]  %s9, 8192, %s64, [#allocation6], 128, 128, 8
    $region41: #{cvae_forward.1} parent=1 // pred_fallthru
      _
    // Predicated region
    $region42: #{cvae_forward.1} parent=1 // pred_check
      _
    $region43: #{cvae_forward.1} parent=1 // pred_check_branch
      %71 = sbr.rel (0) target = $region45
    $region44: #{cvae_forward.1} parent=1 // pred_region
      _
    $region45: #{cvae_forward.1} parent=1 // pred_fallthru
      _
    // Predicated region
    $region46: #{cvae_forward.1} parent=1 // pred_check
      _
    $region47: #{cvae_forward.1} parent=1 // pred_check_branch
      %73 = sbr.rel (0) target = $region49
    $region48: #{cvae_forward.1} parent=1 // pred_region
      %74 = dma.done [#allocation4], 8192
    $region49: #{cvae_forward.1} parent=1 // pred_fallthru
      _
    // Predicated region
    $region50: #{cvae_forward.1} parent=1 // pred_check
      _
    $region51: #{cvae_forward.1} parent=1 // pred_check_branch
      %76 = sbr.rel (0) target = $region53
    $region52: #{cvae_forward.1} parent=1 // pred_region
      %77 = dma.done [#allocation6], 8192
    $region53: #{cvae_forward.1} parent=1 // pred_fallthru
      _
    // Predicated region
    $region54: #{cvae_forward.1} parent=1 // pred_check
      _
    $region55: #{cvae_forward.1} parent=1 // pred_check_branch
      %79 = sbr.rel (0) target = $region57
    $region56: #{cvae_forward.1} parent=1 // pred_region
      %80 = dma.done [#allocation6], 8192
    $region57: #{cvae_forward.1} parent=1 // pred_fallthru
      _
    %v81 = vld [vmem:[%s0] sm:$0xff]
    %v82 = vld [vmem:[%s0 + $0x8] sm:$0xff]
    %v83 = vld [vmem:[%s0 + $0x10] sm:$0xff]
    %v84 = vld [vmem:[%s0 + $0x18] sm:$0xff]
    %v85 = vld [vmem:[%s0 + $0x20] sm:$0xff]
    %v86 = vld [vmem:[%s0 + $0x28] sm:$0xff]
    %v87 = vld [vmem:[%s0 + $0x30] sm:$0xff]
    %v88 = vld [vmem:[%s0 + $0x38] sm:$0xff]
    %v89 = vld [vmem:[%s0 + $0x40] sm:$0xff]
    %v90 = vld [vmem:[%s0 + $0x48] sm:$0xff]
    %v91 = vld [vmem:[%s0 + $0x50] sm:$0xff]
    %v92 = vld [vmem:[%s0 + $0x58] sm:$0xff]
    %v93 = vld [vmem:[%s0 + $0x60] sm:$0xff]
    %v94 = vld [vmem:[%s0 + $0x68] sm:$0xff]
    %v95 = vld [vmem:[%s0 + $0x70] sm:$0xff]
    %v96 = vld [vmem:[%s0 + $0x78] sm:$0xff]
    %v97 = vld [vmem:[%s3] sm:$0xff]
    %v98 = vld [vmem:[%s3 + $0x8] sm:$0xff]
    %v99 = vld [vmem:[%s3 + $0x10] sm:$0xff]
    %v100 = vld [vmem:[%s3 + $0x18] sm:$0xff]
    %v101 = vld [vmem:[%s3 + $0x20] sm:$0xff]
    %v102 = vld [vmem:[%s3 + $0x28] sm:$0xff]
    %v103 = vld [vmem:[%s3 + $0x30] sm:$0xff]
    %v104 = vld [vmem:[%s3 + $0x38] sm:$0xff]
    %v105 = vld [vmem:[%s3 + $0x40] sm:$0xff]
    %v106 = vld [vmem:[%s3 + $0x48] sm:$0xff]
    %v107 = vld [vmem:[%s3 + $0x50] sm:$0xff]
    %v108 = vld [vmem:[%s3 + $0x58] sm:$0xff]
    %v109 = vld [vmem:[%s3 + $0x60] sm:$0xff]
    %v110 = vld [vmem:[%s3 + $0x68] sm:$0xff]
    %v111 = vld [vmem:[%s3 + $0x70] sm:$0xff]
    %v112 = vld [vmem:[%s3 + $0x78] sm:$0xff]
    %v113 = vld [vmem:[%s3 + $0x80] sm:$0xff]
    %v114 = vld [vmem:[%s3 + $0x88] sm:$0xff]
    %v115 = vld [vmem:[%s3 + $0x90] sm:$0xff]
    %v116 = vld [vmem:[%s3 + $0x98] sm:$0xff]
    %v117 = vld [vmem:[%s3 + $0xa0] sm:$0xff]
    %v118 = vld [vmem:[%s3 + $0xa8] sm:$0xff]
    %v119 = vld [vmem:[%s3 + $0xb0] sm:$0xff]
    %v120 = vld [vmem:[%s3 + $0xb8] sm:$0xff]
    %v121 = vld [vmem:[%s3 + $0xc0] sm:$0xff]
    %v122 = vld [vmem:[%s3 + $0xc8] sm:$0xff]
    %v123 = vld [vmem:[%s3 + $0xd0] sm:$0xff]
    %v124 = vld [vmem:[%s3 + $0xd8] sm:$0xff]
    %v125 = vld [vmem:[%s3 + $0xe0] sm:$0xff]
    %v126 = vld [vmem:[%s3 + $0xe8] sm:$0xff]
    %v127 = vld [vmem:[%s3 + $0xf0] sm:$0xff]
    %v128 = vld [vmem:[%s3 + $0xf8] sm:$0xff]
    %v129 = vld [vmem:[%s3 + $0x100] sm:$0xff]
    %v130 = vld [vmem:[%s3 + $0x108] sm:$0xff]
    %v131 = vld [vmem:[%s3 + $0x110] sm:$0xff]
    %v132 = vld [vmem:[%s3 + $0x118] sm:$0xff]
    %v133 = vld [vmem:[%s3 + $0x120] sm:$0xff]
    %v134 = vld [vmem:[%s3 + $0x128] sm:$0xff]
    %v135 = vld [vmem:[%s3 + $0x130] sm:$0xff]
    %v136 = vld [vmem:[%s3 + $0x138] sm:$0xff]
    %v137 = vld [vmem:[%s3 + $0x140] sm:$0xff]
    %v138 = vld [vmem:[%s3 + $0x148] sm:$0xff]
    %v139 = vld [vmem:[%s3 + $0x150] sm:$0xff]
    %v140 = vld [vmem:[%s3 + $0x158] sm:$0xff]
    %v141 = vld [vmem:[%s3 + $0x160] sm:$0xff]
    %v142 = vld [vmem:[%s3 + $0x168] sm:$0xff]
    %v143 = vld [vmem:[%s3 + $0x170] sm:$0xff]
    %v144 = vld [vmem:[%s3 + $0x178] sm:$0xff]
    %v145 = vld [vmem:[%s3 + $0x180] sm:$0xff]
    %v146 = vld [vmem:[%s3 + $0x188] sm:$0xff]
    %v147 = vld [vmem:[%s3 + $0x190] sm:$0xff]
    %v148 = vld [vmem:[%s3 + $0x198] sm:$0xff]
    %v149 = vld [vmem:[%s3 + $0x1a0] sm:$0xff]
    %v150 = vld [vmem:[%s3 + $0x1a8] sm:$0xff]
    %v151 = vld [vmem:[%s3 + $0x1b0] sm:$0xff]
    %v152 = vld [vmem:[%s3 + $0x1b8] sm:$0xff]
    %v153 = vld [vmem:[%s3 + $0x1c0] sm:$0xff]
    %v154 = vld [vmem:[%s3 + $0x1c8] sm:$0xff]
    %v155 = vld [vmem:[%s3 + $0x1d0] sm:$0xff]
    %v156 = vld [vmem:[%s3 + $0x1d8] sm:$0xff]
    %v157 = vld [vmem:[%s3 + $0x1e0] sm:$0xff]
    %v158 = vld [vmem:[%s3 + $0x1e8] sm:$0xff]
    %v159 = vld [vmem:[%s3 + $0x1f0] sm:$0xff]
    %v160 = vld [vmem:[%s3 + $0x1f8] sm:$0xff]
    %v161 = vld [vmem:[%s4] sm:$0xf]
    %v163 = vlaneseq
    %v164 = vshrl.u32 %v163, 7
    %v165 = vsub.s32 0, %v164
    %v166 = vrot.slane %v161, %v165
    %v167 = vlaneseq
    %v168 = vshrl.u32 %v167, 7
    %v169 = vsub.s32 1, %v168
    %v170 = vrot.slane %v161, %v169
    %v171 = vlaneseq
    %v172 = vshrl.u32 %v171, 7
    %v173 = vsub.s32 2, %v172
    %v174 = vrot.slane %v161, %v173
    %v175 = vlaneseq
    %v176 = vshrl.u32 %v175, 7
    %v177 = vsub.s32 3, %v176
    %v178 = vrot.slane %v161, %v177
    %183 = vmatprep.subr.mxu0 %v98
    %184 = vmatpush1.msra.mxu0 %v97
    %185 = vmatprep.subr.mxu0 %v102
    %186 = vmatpush1.msra.mxu0 %v101
    %187 = vmatprep.subr.mxu0 %v106
    %188 = vmatpush1.msra.mxu0 %v105
    %189 = vmatprep.subr.mxu0 %v110
    %190 = vmatpush1.msra.mxu0 %v109
    %191 = vmatprep.subr.mxu0 %v114
    %192 = vmatpush1.msra.mxu0 %v113
    %193 = vmatprep.subr.mxu0 %v118
    %194 = vmatpush1.msra.mxu0 %v117
    %195 = vmatprep.subr.mxu0 %v122
    %196 = vmatpush1.msra.mxu0 %v121
    %197 = vmatprep.subr.mxu0 %v126
    %198 = vmatpush1.msra.mxu0 %v125
    %199 = vmatprep.subr.mxu0 %v130
    %200 = vmatpush1.msra.mxu0 %v129
    %201 = vmatprep.subr.mxu0 %v134
    %202 = vmatpush1.msra.mxu0 %v133
    %203 = vmatprep.subr.mxu0 %v138
    %204 = vmatpush1.msra.mxu0 %v137
    %205 = vmatprep.subr.mxu0 %v142
    %206 = vmatpush1.msra.mxu0 %v141
    %207 = vmatprep.subr.mxu0 %v146
    %208 = vmatpush1.msra.mxu0 %v145
    %209 = vmatprep.subr.mxu0 %v150
    %210 = vmatpush1.msra.mxu0 %v149
    %211 = vmatprep.subr.mxu0 %v154
    %212 = vmatpush1.msra.mxu0 %v153
    %213 = vmatprep.subr.mxu0 %v158
    %214 = vmatpush1.msra.mxu0 %v157
    %215 = vmatprep.subr.mxu0 0.0
    %216 = vmatpush1.msra.mxu0 0.0
    %217 = vmatprep.subr.mxu0 0.0
    %218 = vmatpush1.msra.mxu0 0.0
    %219 = vmatprep.subr.mxu0 0.0
    %220 = vmatpush1.msra.mxu0 0.0
    %221 = vmatprep.subr.mxu0 0.0
    %222 = vmatpush1.msra.mxu0 0.0
    %223 = vmatprep.subr.mxu0 0.0
    %224 = vmatpush1.msra.mxu0 0.0
    %225 = vmatprep.subr.mxu0 0.0
    %226 = vmatpush1.msra.mxu0 0.0
    %227 = vmatprep.subr.mxu0 0.0
    %228 = vmatpush1.msra.mxu0 0.0
    %229 = vmatprep.subr.mxu0 0.0
    %230 = vmatpush1.msra.mxu0 0.0
    %231 = vmatprep.subr.mxu0 0.0
    %232 = vmatpush1.msra.mxu0 0.0
    %233 = vmatprep.subr.mxu0 0.0
    %234 = vmatpush1.msra.mxu0 0.0
    %235 = vmatprep.subr.mxu0 0.0
    %236 = vmatpush1.msra.mxu0 0.0
    %237 = vmatprep.subr.mxu0 0.0
    %238 = vmatpush1.msra.mxu0 0.0
    %239 = vmatprep.subr.mxu0 0.0
    %240 = vmatpush1.msra.mxu0 0.0
    %241 = vmatprep.subr.mxu0 0.0
    %242 = vmatpush1.msra.mxu0 0.0
    %243 = vmatprep.subr.mxu0 0.0
    %244 = vmatpush1.msra.mxu0 0.0
    %245 = vmatprep.subr.mxu0 0.0
    %246 = vmatpush1.msra.mxu0 0.0
    %247 = vmatprep.mubr.f32.mxu0 0.0
    %248 = vmatmul.mubr.f32.gmra.mrb[0].mxu0 %v81
    %v249 = vpop.f32.mrb[0].mxu0
    %v250 = vadd.f32 %v166, %v249
    %v251 = vpop.f32.mrb[0].mxu0
    %v252 = vadd.f32 %v170, %v251
    %253 = vmatprep.mubr.f32.mxu0 0.0
    %254 = vmatmul.mubr.f32.gmra.mrb[0].mxu0 %v82
    %v255 = vpop.f32.mrb[0].mxu0
    %v256 = vadd.f32 %v166, %v255
    %v257 = vpop.f32.mrb[0].mxu0
    %v258 = vadd.f32 %v170, %v257
    %259 = vmatprep.mubr.f32.mxu0 0.0
    %260 = vmatmul.mubr.f32.gmra.mrb[0].mxu0 %v83
    %v261 = vpop.f32.mrb[0].mxu0
    %v262 = vadd.f32 %v166, %v261
    %v263 = vpop.f32.mrb[0].mxu0
    %v264 = vadd.f32 %v170, %v263
    %265 = vmatprep.mubr.f32.mxu0 0.0
    %266 = vmatmul.mubr.f32.gmra.mrb[0].mxu0 %v84
    %v267 = vpop.f32.mrb[0].mxu0
    %v268 = vadd.f32 %v166, %v267
    %v269 = vpop.f32.mrb[0].mxu0
    %v270 = vadd.f32 %v170, %v269
    %271 = vmatprep.mubr.f32.mxu0 0.0
    %272 = vmatmul.mubr.f32.gmra.mrb[0].mxu0 %v85
    %v273 = vpop.f32.mrb[0].mxu0
    %v274 = vadd.f32 %v166, %v273
    %v275 = vpop.f32.mrb[0].mxu0
    %v276 = vadd.f32 %v170, %v275
    %277 = vmatprep.mubr.f32.mxu0 0.0
    %278 = vmatmul.mubr.f32.gmra.mrb[0].mxu0 %v86
    %v279 = vpop.f32.mrb[0].mxu0
    %v280 = vadd.f32 %v166, %v279
    %v281 = vpop.f32.mrb[0].mxu0
    %v282 = vadd.f32 %v170, %v281
    %283 = vmatprep.mubr.f32.mxu0 0.0
    %284 = vmatmul.mubr.f32.gmra.mrb[0].mxu0 %v87
    %v285 = vpop.f32.mrb[0].mxu0
    %v286 = vadd.f32 %v166, %v285
    %v287 = vpop.f32.mrb[0].mxu0
    %v288 = vadd.f32 %v170, %v287
    %289 = vmatprep.mubr.f32.mxu0 0.0
    %290 = vmatmul.mubr.f32.gmra.mrb[0].mxu0 %v88
    %v291 = vpop.f32.mrb[0].mxu0
    %v292 = vadd.f32 %v166, %v291
    %v293 = vpop.f32.mrb[0].mxu0
    %v294 = vadd.f32 %v170, %v293
    %295 = vmatprep.mubr.f32.mxu0 0.0
    %296 = vmatmul.mubr.f32.gmra.mrb[0].mxu0 %v89
    %v297 = vpop.f32.mrb[0].mxu0
    %v298 = vadd.f32 %v166, %v297
    %v299 = vpop.f32.mrb[0].mxu0
    %v300 = vadd.f32 %v170, %v299
    %301 = vmatprep.mubr.f32.mxu0 0.0
    %302 = vmatmul.mubr.f32.gmra.mrb[0].mxu0 %v90
    %v303 = vpop.f32.mrb[0].mxu0
    %v304 = vadd.f32 %v166, %v303
    %v305 = vpop.f32.mrb[0].mxu0
    %v306 = vadd.f32 %v170, %v305
    %307 = vmatprep.mubr.f32.mxu0 0.0
    %308 = vmatmul.mubr.f32.gmra.mrb[0].mxu0 %v91
    %v309 = vpop.f32.mrb[0].mxu0
    %v310 = vadd.f32 %v166, %v309
    %v311 = vpop.f32.mrb[0].mxu0
    %v312 = vadd.f32 %v170, %v311
    %313 = vmatprep.mubr.f32.mxu0 0.0
    %314 = vmatmul.mubr.f32.gmra.mrb[0].mxu0 %v92
    %v315 = vpop.f32.mrb[0].mxu0
    %v316 = vadd.f32 %v166, %v315
    %v317 = vpop.f32.mrb[0].mxu0
    %v318 = vadd.f32 %v170, %v317
    %319 = vmatprep.mubr.f32.mxu0 0.0
    %320 = vmatmul.mubr.f32.gmra.mrb[0].mxu0 %v93
    %v321 = vpop.f32.mrb[0].mxu0
    %v322 = vadd.f32 %v166, %v321
    %v323 = vpop.f32.mrb[0].mxu0
    %v324 = vadd.f32 %v170, %v323
    %325 = vmatprep.mubr.f32.mxu0 0.0
    %326 = vmatmul.mubr.f32.gmra.mrb[0].mxu0 %v94
    %v327 = vpop.f32.mrb[0].mxu0
    %v328 = vadd.f32 %v166, %v327
    %v329 = vpop.f32.mrb[0].mxu0
    %v330 = vadd.f32 %v170, %v329
    %331 = vmatprep.mubr.f32.mxu0 0.0
    %332 = vmatmul.mubr.f32.gmra.mrb[0].mxu0 %v95
    %v333 = vpop.f32.mrb[0].mxu0
    %v334 = vadd.f32 %v166, %v333
    %v335 = vpop.f32.mrb[0].mxu0
    %v336 = vadd.f32 %v170, %v335
    %337 = vmatprep.mubr.f32.mxu0 0.0
    %338 = vmatmul.mubr.f32.gmra.mrb[0].mxu0 %v96
    %v339 = vpop.f32.mrb[0].mxu0
    %v340 = vadd.f32 %v166, %v339
    %v341 = vpop.f32.mrb[0].mxu0
    %v342 = vadd.f32 %v170, %v341
    %343 = vdwg.mxu0
    %344 = vmatprep.subr.mxu0 %v100
    %345 = vmatpush1.msra.mxu0 %v99
    %346 = vmatprep.subr.mxu0 %v104
    %347 = vmatpush1.msra.mxu0 %v103
    %348 = vmatprep.subr.mxu0 %v108
    %349 = vmatpush1.msra.mxu0 %v107
    %350 = vmatprep.subr.mxu0 %v112
    %351 = vmatpush1.msra.mxu0 %v111
    %352 = vmatprep.subr.mxu0 %v116
    %353 = vmatpush1.msra.mxu0 %v115
    %354 = vmatprep.subr.mxu0 %v120
    %355 = vmatpush1.msra.mxu0 %v119
    %356 = vmatprep.subr.mxu0 %v124
    %357 = vmatpush1.msra.mxu0 %v123
    %358 = vmatprep.subr.mxu0 %v128
    %359 = vmatpush1.msra.mxu0 %v127
    %360 = vmatprep.subr.mxu0 %v132
    %361 = vmatpush1.msra.mxu0 %v131
    %362 = vmatprep.subr.mxu0 %v136
    %363 = vmatpush1.msra.mxu0 %v135
    %364 = vmatprep.subr.mxu0 %v140
    %365 = vmatpush1.msra.mxu0 %v139
    %366 = vmatprep.subr.mxu0 %v144
    %367 = vmatpush1.msra.mxu0 %v143
    %368 = vmatprep.subr.mxu0 %v148
    %369 = vmatpush1.msra.mxu0 %v147
    %370 = vmatprep.subr.mxu0 %v152
    %371 = vmatpush1.msra.mxu0 %v151
    %372 = vmatprep.subr.mxu0 %v156
    %373 = vmatpush1.msra.mxu0 %v155
    %374 = vmatprep.subr.mxu0 %v160
    %375 = vmatpush1.msra.mxu0 %v159
    %376 = vmatprep.subr.mxu0 0.0
    %377 = vmatpush1.msra.mxu0 0.0
    %378 = vmatprep.subr.mxu0 0.0
    %379 = vmatpush1.msra.mxu0 0.0
    %380 = vmatprep.subr.mxu0 0.0
    %381 = vmatpush1.msra.mxu0 0.0
    %382 = vmatprep.subr.mxu0 0.0
    %383 = vmatpush1.msra.mxu0 0.0
    %384 = vmatprep.subr.mxu0 0.0
    %385 = vmatpush1.msra.mxu0 0.0
    %386 = vmatprep.subr.mxu0 0.0
    %387 = vmatpush1.msra.mxu0 0.0
    %388 = vmatprep.subr.mxu0 0.0
    %389 = vmatpush1.msra.mxu0 0.0
    %390 = vmatprep.subr.mxu0 0.0
    %391 = vmatpush1.msra.mxu0 0.0
    %392 = vmatprep.subr.mxu0 0.0
    %393 = vmatpush1.msra.mxu0 0.0
    %394 = vmatprep.subr.mxu0 0.0
    %395 = vmatpush1.msra.mxu0 0.0
    %396 = vmatprep.subr.mxu0 0.0
    %397 = vmatpush1.msra.mxu0 0.0
    %398 = vmatprep.subr.mxu0 0.0
    %399 = vmatpush1.msra.mxu0 0.0
    %400 = vmatprep.subr.mxu0 0.0
    %401 = vmatpush1.msra.mxu0 0.0
    %402 = vmatprep.subr.mxu0 0.0
    %403 = vmatpush1.msra.mxu0 0.0
    %404 = vmatprep.subr.mxu0 0.0
    %405 = vmatpush1.msra.mxu0 0.0
    %406 = vmatprep.subr.mxu0 0.0
    %407 = vmatpush1.msra.mxu0 0.0
    %408 = vmatprep.mubr.f32.mxu0 0.0
    %409 = vmatmul.mubr.f32.gmra.mrb[0].mxu0 %v81
    %v410 = vpop.f32.mrb[0].mxu0
    %v411 = vadd.f32 %v174, %v410
    %v412 = vpop.f32.mrb[0].mxu0
    %v413 = vadd.f32 %v178, %v412
    %414 = vmatprep.mubr.f32.mxu0 0.0
    %415 = vmatmul.mubr.f32.gmra.mrb[0].mxu0 %v82
    %v416 = vpop.f32.mrb[0].mxu0
    %v417 = vadd.f32 %v174, %v416
    %v418 = vpop.f32.mrb[0].mxu0
    %v419 = vadd.f32 %v178, %v418
    %420 = vmatprep.mubr.f32.mxu0 0.0
    %421 = vmatmul.mubr.f32.gmra.mrb[0].mxu0 %v83
    %v422 = vpop.f32.mrb[0].mxu0
    %v423 = vadd.f32 %v174, %v422
    %v424 = vpop.f32.mrb[0].mxu0
    %v425 = vadd.f32 %v178, %v424
    %426 = vmatprep.mubr.f32.mxu0 0.0
    %427 = vmatmul.mubr.f32.gmra.mrb[0].mxu0 %v84
    %v428 = vpop.f32.mrb[0].mxu0
    %v429 = vadd.f32 %v174, %v428
    %v430 = vpop.f32.mrb[0].mxu0
    %v431 = vadd.f32 %v178, %v430
    %432 = vmatprep.mubr.f32.mxu0 0.0
    %433 = vmatmul.mubr.f32.gmra.mrb[0].mxu0 %v85
    %v434 = vpop.f32.mrb[0].mxu0
    %v435 = vadd.f32 %v174, %v434
    %v436 = vpop.f32.mrb[0].mxu0
    %v437 = vadd.f32 %v178, %v436
    %438 = vmatprep.mubr.f32.mxu0 0.0
    %439 = vmatmul.mubr.f32.gmra.mrb[0].mxu0 %v86
    %v440 = vpop.f32.mrb[0].mxu0
    %v441 = vadd.f32 %v174, %v440
    %v442 = vpop.f32.mrb[0].mxu0
    %v443 = vadd.f32 %v178, %v442
    %444 = vmatprep.mubr.f32.mxu0 0.0
    %445 = vmatmul.mubr.f32.gmra.mrb[0].mxu0 %v87
    %v446 = vpop.f32.mrb[0].mxu0
    %v447 = vadd.f32 %v174, %v446
    %v448 = vpop.f32.mrb[0].mxu0
    %v449 = vadd.f32 %v178, %v448
    %450 = vmatprep.mubr.f32.mxu0 0.0
    %451 = vmatmul.mubr.f32.gmra.mrb[0].mxu0 %v88
    %v452 = vpop.f32.mrb[0].mxu0
    %v453 = vadd.f32 %v174, %v452
    %v454 = vpop.f32.mrb[0].mxu0
    %v455 = vadd.f32 %v178, %v454
    %456 = vmatprep.mubr.f32.mxu0 0.0
    %457 = vmatmul.mubr.f32.gmra.mrb[0].mxu0 %v89
    %v458 = vpop.f32.mrb[0].mxu0
    %v459 = vadd.f32 %v174, %v458
    %v460 = vpop.f32.mrb[0].mxu0
    %v461 = vadd.f32 %v178, %v460
    %462 = vmatprep.mubr.f32.mxu0 0.0
    %463 = vmatmul.mubr.f32.gmra.mrb[0].mxu0 %v90
    %v464 = vpop.f32.mrb[0].mxu0
    %v465 = vadd.f32 %v174, %v464
    %v466 = vpop.f32.mrb[0].mxu0
    %v467 = vadd.f32 %v178, %v466
    %468 = vmatprep.mubr.f32.mxu0 0.0
    %469 = vmatmul.mubr.f32.gmra.mrb[0].mxu0 %v91
    %v470 = vpop.f32.mrb[0].mxu0
    %v471 = vadd.f32 %v174, %v470
    %v472 = vpop.f32.mrb[0].mxu0
    %v473 = vadd.f32 %v178, %v472
    %474 = vmatprep.mubr.f32.mxu0 0.0
    %475 = vmatmul.mubr.f32.gmra.mrb[0].mxu0 %v92
    %v476 = vpop.f32.mrb[0].mxu0
    %v477 = vadd.f32 %v174, %v476
    %v478 = vpop.f32.mrb[0].mxu0
    %v479 = vadd.f32 %v178, %v478
    %480 = vmatprep.mubr.f32.mxu0 0.0
    %481 = vmatmul.mubr.f32.gmra.mrb[0].mxu0 %v93
    %v482 = vpop.f32.mrb[0].mxu0
    %v483 = vadd.f32 %v174, %v482
    %v484 = vpop.f32.mrb[0].mxu0
    %v485 = vadd.f32 %v178, %v484
    %486 = vmatprep.mubr.f32.mxu0 0.0
    %487 = vmatmul.mubr.f32.gmra.mrb[0].mxu0 %v94
    %v488 = vpop.f32.mrb[0].mxu0
    %v489 = vadd.f32 %v174, %v488
    %v490 = vpop.f32.mrb[0].mxu0
    %v491 = vadd.f32 %v178, %v490
    %492 = vmatprep.mubr.f32.mxu0 0.0
    %493 = vmatmul.mubr.f32.gmra.mrb[0].mxu0 %v95
    %v494 = vpop.f32.mrb[0].mxu0
    %v495 = vadd.f32 %v174, %v494
    %v496 = vpop.f32.mrb[0].mxu0
    %v497 = vadd.f32 %v178, %v496
    %498 = vmatprep.mubr.f32.mxu0 0.0
    %499 = vmatmul.mubr.f32.gmra.mrb[0].mxu0 %v96
    %v500 = vpop.f32.mrb[0].mxu0
    %v501 = vadd.f32 %v174, %v500
    %v502 = vpop.f32.mrb[0].mxu0
    %v503 = vadd.f32 %v178, %v502
    %504 = vdwg.mxu0
    %v505 = vmax.f32 %v250, 0.0
    %v506 = vmax.f32 %v252, 0.0
    %v507 = vmax.f32 %v411, 0.0
    %v508 = vmax.f32 %v413, 0.0
    %v509 = vmax.f32 %v256, 0.0
    %v510 = vmax.f32 %v258, 0.0
    %v511 = vmax.f32 %v417, 0.0
    %v512 = vmax.f32 %v419, 0.0
    %v513 = vmax.f32 %v262, 0.0
    %v514 = vmax.f32 %v264, 0.0
    %v515 = vmax.f32 %v423, 0.0
    %v516 = vmax.f32 %v425, 0.0
    %v517 = vmax.f32 %v268, 0.0
    %v518 = vmax.f32 %v270, 0.0
    %v519 = vmax.f32 %v429, 0.0
    %v520 = vmax.f32 %v431, 0.0
    %v521 = vmax.f32 %v274, 0.0
    %v522 = vmax.f32 %v276, 0.0
    %v523 = vmax.f32 %v435, 0.0
    %v524 = vmax.f32 %v437, 0.0
    %v525 = vmax.f32 %v280, 0.0
    %v526 = vmax.f32 %v282, 0.0
    %v527 = vmax.f32 %v441, 0.0
    %v528 = vmax.f32 %v443, 0.0
    %v529 = vmax.f32 %v286, 0.0
    %v530 = vmax.f32 %v288, 0.0
    %v531 = vmax.f32 %v447, 0.0
    %v532 = vmax.f32 %v449, 0.0
    %v533 = vmax.f32 %v292, 0.0
    %v534 = vmax.f32 %v294, 0.0
    %v535 = vmax.f32 %v453, 0.0
    %v536 = vmax.f32 %v455, 0.0
    %v537 = vmax.f32 %v298, 0.0
    %v538 = vmax.f32 %v300, 0.0
    %v539 = vmax.f32 %v459, 0.0
    %v540 = vmax.f32 %v461, 0.0
    %v541 = vmax.f32 %v304, 0.0
    %v542 = vmax.f32 %v306, 0.0
    %v543 = vmax.f32 %v465, 0.0
    %v544 = vmax.f32 %v467, 0.0
    %v545 = vmax.f32 %v310, 0.0
    %v546 = vmax.f32 %v312, 0.0
    %v547 = vmax.f32 %v471, 0.0
    %v548 = vmax.f32 %v473, 0.0
    %v549 = vmax.f32 %v316, 0.0
    %v550 = vmax.f32 %v318, 0.0
    %v551 = vmax.f32 %v477, 0.0
    %v552 = vmax.f32 %v479, 0.0
    %v553 = vmax.f32 %v322, 0.0
    %v554 = vmax.f32 %v324, 0.0
    %v555 = vmax.f32 %v483, 0.0
    %v556 = vmax.f32 %v485, 0.0
    %v557 = vmax.f32 %v328, 0.0
    %v558 = vmax.f32 %v330, 0.0
    %v559 = vmax.f32 %v489, 0.0
    %v560 = vmax.f32 %v491, 0.0
    %v561 = vmax.f32 %v334, 0.0
    %v562 = vmax.f32 %v336, 0.0
    %v563 = vmax.f32 %v495, 0.0
    %v564 = vmax.f32 %v497, 0.0
    %v565 = vmax.f32 %v340, 0.0
    %v566 = vmax.f32 %v342, 0.0
    %v567 = vmax.f32 %v501, 0.0
    %v568 = vmax.f32 %v503, 0.0
    %v569 = vld [vmem:[#allocation3] sm:$0xff]
    %v570 = vld [vmem:[#allocation3 + $0x8] sm:$0xff]
    %v571 = vld [vmem:[#allocation3 + $0x10] sm:$0xff]
    %v572 = vld [vmem:[#allocation3 + $0x18] sm:$0xff]
    %v573 = vld [vmem:[#allocation3 + $0x20] sm:$0xff]
    %v574 = vld [vmem:[#allocation3 + $0x28] sm:$0xff]
    %v575 = vld [vmem:[#allocation3 + $0x30] sm:$0xff]
    %v576 = vld [vmem:[#allocation3 + $0x38] sm:$0xff]
    %v577 = vld [vmem:[#allocation3 + $0x40] sm:$0xff]
    %v578 = vld [vmem:[#allocation3 + $0x48] sm:$0xff]
    %v579 = vld [vmem:[#allocation3 + $0x50] sm:$0xff]
    %v580 = vld [vmem:[#allocation3 + $0x58] sm:$0xff]
    %v581 = vld [vmem:[#allocation3 + $0x60] sm:$0xff]
    %v582 = vld [vmem:[#allocation3 + $0x68] sm:$0xff]
    %v583 = vld [vmem:[#allocation3 + $0x70] sm:$0xff]
    %v584 = vld [vmem:[#allocation3 + $0x78] sm:$0xff]
    %v585 = vld [vmem:[#allocation3 + $0x80] sm:$0xff]
    %v586 = vld [vmem:[#allocation3 + $0x88] sm:$0xff]
    %v587 = vld [vmem:[#allocation3 + $0x90] sm:$0xff]
    %v588 = vld [vmem:[#allocation3 + $0x98] sm:$0xff]
    %v589 = vld [vmem:[#allocation3 + $0xa0] sm:$0xff]
    %v590 = vld [vmem:[#allocation3 + $0xa8] sm:$0xff]
    %v591 = vld [vmem:[#allocation3 + $0xb0] sm:$0xff]
    %v592 = vld [vmem:[#allocation3 + $0xb8] sm:$0xff]
    %v593 = vld [vmem:[#allocation3 + $0xc0] sm:$0xff]
    %v594 = vld [vmem:[#allocation3 + $0xc8] sm:$0xff]
    %v595 = vld [vmem:[#allocation3 + $0xd0] sm:$0xff]
    %v596 = vld [vmem:[#allocation3 + $0xd8] sm:$0xff]
    %v597 = vld [vmem:[#allocation3 + $0xe0] sm:$0xff]
    %v598 = vld [vmem:[#allocation3 + $0xe8] sm:$0xff]
    %v599 = vld [vmem:[#allocation3 + $0xf0] sm:$0xff]
    %v600 = vld [vmem:[#allocation3 + $0xf8] sm:$0xff]
    %v601 = vld [vmem:[#allocation3 + $0x100] sm:$0xff]
    %v602 = vld [vmem:[#allocation3 + $0x108] sm:$0xff]
    %v603 = vld [vmem:[#allocation3 + $0x110] sm:$0xff]
    %v604 = vld [vmem:[#allocation3 + $0x118] sm:$0xff]
    %v605 = vld [vmem:[#allocation3 + $0x120] sm:$0xff]
    %v606 = vld [vmem:[#allocation3 + $0x128] sm:$0xff]
    %v607 = vld [vmem:[#allocation3 + $0x130] sm:$0xff]
    %v608 = vld [vmem:[#allocation3 + $0x138] sm:$0xff]
    %v609 = vld [vmem:[#allocation3 + $0x140] sm:$0xff]
    %v610 = vld [vmem:[#allocation3 + $0x148] sm:$0xff]
    %v611 = vld [vmem:[#allocation3 + $0x150] sm:$0xff]
    %v612 = vld [vmem:[#allocation3 + $0x158] sm:$0xff]
    %v613 = vld [vmem:[#allocation3 + $0x160] sm:$0xff]
    %v614 = vld [vmem:[#allocation3 + $0x168] sm:$0xff]
    %v615 = vld [vmem:[#allocation3 + $0x170] sm:$0xff]
    %v616 = vld [vmem:[#allocation3 + $0x178] sm:$0xff]
    %v617 = vld [vmem:[#allocation3 + $0x180] sm:$0xff]
    %v618 = vld [vmem:[#allocation3 + $0x188] sm:$0xff]
    %v619 = vld [vmem:[#allocation3 + $0x190] sm:$0xff]
    %v620 = vld [vmem:[#allocation3 + $0x198] sm:$0xff]
    %v621 = vld [vmem:[#allocation3 + $0x1a0] sm:$0xff]
    %v622 = vld [vmem:[#allocation3 + $0x1a8] sm:$0xff]
    %v623 = vld [vmem:[#allocation3 + $0x1b0] sm:$0xff]
    %v624 = vld [vmem:[#allocation3 + $0x1b8] sm:$0xff]
    %v625 = vld [vmem:[#allocation3 + $0x1c0] sm:$0xff]
    %v626 = vld [vmem:[#allocation3 + $0x1c8] sm:$0xff]
    %v627 = vld [vmem:[#allocation3 + $0x1d0] sm:$0xff]
    %v628 = vld [vmem:[#allocation3 + $0x1d8] sm:$0xff]
    %v629 = vld [vmem:[#allocation3 + $0x1e0] sm:$0xff]
    %v630 = vld [vmem:[#allocation3 + $0x1e8] sm:$0xff]
    %v631 = vld [vmem:[#allocation3 + $0x1f0] sm:$0xff]
    %v632 = vld [vmem:[#allocation3 + $0x1f8] sm:$0xff]
    %v633 = vld [vmem:[%s6] sm:$0x1]
    %v635 = vlaneseq
    %v636 = vshrl.u32 %v635, 7
    %v637 = vsub.s32 0, %v636
    %v638 = vrot.slane %v633, %v637
    %640 = vmatprep.subr.mxu0 0.0
    %641 = vmatpush1.msra.mxu0 %v569
    %642 = vmatprep.subr.mxu0 0.0
    %643 = vmatpush1.msra.mxu0 %v570
    %644 = vmatprep.subr.mxu0 0.0
    %645 = vmatpush1.msra.mxu0 %v571
    %646 = vmatprep.subr.mxu0 0.0
    %647 = vmatpush1.msra.mxu0 %v572
    %648 = vmatprep.subr.mxu0 0.0
    %649 = vmatpush1.msra.mxu0 %v573
    %650 = vmatprep.subr.mxu0 0.0
    %651 = vmatpush1.msra.mxu0 %v574
    %652 = vmatprep.subr.mxu0 0.0
    %653 = vmatpush1.msra.mxu0 %v575
    %654 = vmatprep.subr.mxu0 0.0
    %655 = vmatpush1.msra.mxu0 %v576
    %656 = vmatprep.subr.mxu0 0.0
    %657 = vmatpush1.msra.mxu0 %v577
    %658 = vmatprep.subr.mxu0 0.0
    %659 = vmatpush1.msra.mxu0 %v578
    %660 = vmatprep.subr.mxu0 0.0
    %661 = vmatpush1.msra.mxu0 %v579
    %662 = vmatprep.subr.mxu0 0.0
    %663 = vmatpush1.msra.mxu0 %v580
    %664 = vmatprep.subr.mxu0 0.0
    %665 = vmatpush1.msra.mxu0 %v581
    %666 = vmatprep.subr.mxu0 0.0
    %667 = vmatpush1.msra.mxu0 %v582
    %668 = vmatprep.subr.mxu0 0.0
    %669 = vmatpush1.msra.mxu0 %v583
    %670 = vmatprep.subr.mxu0 0.0
    %671 = vmatpush1.msra.mxu0 %v584
    %672 = vmatprep.subr.mxu0 0.0
    %673 = vmatpush1.msra.mxu0 %v585
    %674 = vmatprep.subr.mxu0 0.0
    %675 = vmatpush1.msra.mxu0 %v586
    %676 = vmatprep.subr.mxu0 0.0
    %677 = vmatpush1.msra.mxu0 %v587
    %678 = vmatprep.subr.mxu0 0.0
    %679 = vmatpush1.msra.mxu0 %v588
    %680 = vmatprep.subr.mxu0 0.0
    %681 = vmatpush1.msra.mxu0 %v589
    %682 = vmatprep.subr.mxu0 0.0
    %683 = vmatpush1.msra.mxu0 %v590
    %684 = vmatprep.subr.mxu0 0.0
    %685 = vmatpush1.msra.mxu0 %v591
    %686 = vmatprep.subr.mxu0 0.0
    %687 = vmatpush1.msra.mxu0 %v592
    %688 = vmatprep.subr.mxu0 0.0
    %689 = vmatpush1.msra.mxu0 %v593
    %690 = vmatprep.subr.mxu0 0.0
    %691 = vmatpush1.msra.mxu0 %v594
    %692 = vmatprep.subr.mxu0 0.0
    %693 = vmatpush1.msra.mxu0 %v595
    %694 = vmatprep.subr.mxu0 0.0
    %695 = vmatpush1.msra.mxu0 %v596
    %696 = vmatprep.subr.mxu0 0.0
    %697 = vmatpush1.msra.mxu0 %v597
    %698 = vmatprep.subr.mxu0 0.0
    %699 = vmatpush1.msra.mxu0 %v598
    %700 = vmatprep.subr.mxu0 0.0
    %701 = vmatpush1.msra.mxu0 %v599
    %702 = vmatprep.subr.mxu0 0.0
    %703 = vmatpush1.msra.mxu0 %v600
    %704 = vmatprep.mubr.f32.mxu0 %v506
    %705 = vmatmul.mubr.f32.gmra.mrb[0].mxu0 %v505
    %v706 = vpop.f32.mrb[0].mxu0
    %v707 = vadd.f32 %v638, %v706
    %v708 = vpop.f32.mrb[0].mxu0
    %709 = vmatprep.mubr.f32.mxu0 %v510
    %710 = vmatmul.mubr.f32.gmra.mrb[0].mxu0 %v509
    %v711 = vpop.f32.mrb[0].mxu0
    %v712 = vadd.f32 %v638, %v711
    %v713 = vpop.f32.mrb[0].mxu0
    %714 = vmatprep.mubr.f32.mxu0 %v514
    %715 = vmatmul.mubr.f32.gmra.mrb[0].mxu0 %v513
    %v716 = vpop.f32.mrb[0].mxu0
    %v717 = vadd.f32 %v638, %v716
    %v718 = vpop.f32.mrb[0].mxu0
    %719 = vmatprep.mubr.f32.mxu0 %v518
    %720 = vmatmul.mubr.f32.gmra.mrb[0].mxu0 %v517
    %v721 = vpop.f32.mrb[0].mxu0
    %v722 = vadd.f32 %v638, %v721
    %v723 = vpop.f32.mrb[0].mxu0
    %724 = vmatprep.mubr.f32.mxu0 %v522
    %725 = vmatmul.mubr.f32.gmra.mrb[0].mxu0 %v521
    %v726 = vpop.f32.mrb[0].mxu0
    %v727 = vadd.f32 %v638, %v726
    %v728 = vpop.f32.mrb[0].mxu0
    %729 = vmatprep.mubr.f32.mxu0 %v526
    %730 = vmatmul.mubr.f32.gmra.mrb[0].mxu0 %v525
    %v731 = vpop.f32.mrb[0].mxu0
    %v732 = vadd.f32 %v638, %v731
    %v733 = vpop.f32.mrb[0].mxu0
    %734 = vmatprep.mubr.f32.mxu0 %v530
    %735 = vmatmul.mubr.f32.gmra.mrb[0].mxu0 %v529
    %v736 = vpop.f32.mrb[0].mxu0
    %v737 = vadd.f32 %v638, %v736
    %v738 = vpop.f32.mrb[0].mxu0
    %739 = vmatprep.mubr.f32.mxu0 %v534
    %740 = vmatmul.mubr.f32.gmra.mrb[0].mxu0 %v533
    %v741 = vpop.f32.mrb[0].mxu0
    %v742 = vadd.f32 %v638, %v741
    %v743 = vpop.f32.mrb[0].mxu0
    %744 = vmatprep.mubr.f32.mxu0 %v538
    %745 = vmatmul.mubr.f32.gmra.mrb[0].mxu0 %v537
    %v746 = vpop.f32.mrb[0].mxu0
    %v747 = vadd.f32 %v638, %v746
    %v748 = vpop.f32.mrb[0].mxu0
    %749 = vmatprep.mubr.f32.mxu0 %v542
    %750 = vmatmul.mubr.f32.gmra.mrb[0].mxu0 %v541
    %v751 = vpop.f32.mrb[0].mxu0
    %v752 = vadd.f32 %v638, %v751
    %v753 = vpop.f32.mrb[0].mxu0
    %754 = vmatprep.mubr.f32.mxu0 %v546
    %755 = vmatmul.mubr.f32.gmra.mrb[0].mxu0 %v545
    %v756 = vpop.f32.mrb[0].mxu0
    %v757 = vadd.f32 %v638, %v756
    %v758 = vpop.f32.mrb[0].mxu0
    %759 = vmatprep.mubr.f32.mxu0 %v550
    %760 = vmatmul.mubr.f32.gmra.mrb[0].mxu0 %v549
    %v761 = vpop.f32.mrb[0].mxu0
    %v762 = vadd.f32 %v638, %v761
    %v763 = vpop.f32.mrb[0].mxu0
    %764 = vmatprep.mubr.f32.mxu0 %v554
    %765 = vmatmul.mubr.f32.gmra.mrb[0].mxu0 %v553
    %v766 = vpop.f32.mrb[0].mxu0
    %v767 = vadd.f32 %v638, %v766
    %v768 = vpop.f32.mrb[0].mxu0
    %769 = vmatprep.mubr.f32.mxu0 %v558
    %770 = vmatmul.mubr.f32.gmra.mrb[0].mxu0 %v557
    %v771 = vpop.f32.mrb[0].mxu0
    %v772 = vadd.f32 %v638, %v771
    %v773 = vpop.f32.mrb[0].mxu0
    %774 = vmatprep.mubr.f32.mxu0 %v562
    %775 = vmatmul.mubr.f32.gmra.mrb[0].mxu0 %v561
    %v776 = vpop.f32.mrb[0].mxu0
    %v777 = vadd.f32 %v638, %v776
    %v778 = vpop.f32.mrb[0].mxu0
    %779 = vmatprep.mubr.f32.mxu0 %v566
    %780 = vmatmul.mubr.f32.gmra.mrb[0].mxu0 %v565
    %v781 = vpop.f32.mrb[0].mxu0
    %v782 = vadd.f32 %v638, %v781
    %v783 = vpop.f32.mrb[0].mxu0
    %784 = vdwg.mxu0
    %785 = vmatprep.subr.mxu0 0.0
    %786 = vmatpush1.msra.mxu0 %v601
    %787 = vmatprep.subr.mxu0 0.0
    %788 = vmatpush1.msra.mxu0 %v602
    %789 = vmatprep.subr.mxu0 0.0
    %790 = vmatpush1.msra.mxu0 %v603
    %791 = vmatprep.subr.mxu0 0.0
    %792 = vmatpush1.msra.mxu0 %v604
    %793 = vmatprep.subr.mxu0 0.0
    %794 = vmatpush1.msra.mxu0 %v605
    %795 = vmatprep.subr.mxu0 0.0
    %796 = vmatpush1.msra.mxu0 %v606
    %797 = vmatprep.subr.mxu0 0.0
    %798 = vmatpush1.msra.mxu0 %v607
    %799 = vmatprep.subr.mxu0 0.0
    %800 = vmatpush1.msra.mxu0 %v608
    %801 = vmatprep.subr.mxu0 0.0
    %802 = vmatpush1.msra.mxu0 %v609
    %803 = vmatprep.subr.mxu0 0.0
    %804 = vmatpush1.msra.mxu0 %v610
    %805 = vmatprep.subr.mxu0 0.0
    %806 = vmatpush1.msra.mxu0 %v611
    %807 = vmatprep.subr.mxu0 0.0
    %808 = vmatpush1.msra.mxu0 %v612
    %809 = vmatprep.subr.mxu0 0.0
    %810 = vmatpush1.msra.mxu0 %v613
    %811 = vmatprep.subr.mxu0 0.0
    %812 = vmatpush1.msra.mxu0 %v614
    %813 = vmatprep.subr.mxu0 0.0
    %814 = vmatpush1.msra.mxu0 %v615
    %815 = vmatprep.subr.mxu0 0.0
    %816 = vmatpush1.msra.mxu0 %v616
    %817 = vmatprep.subr.mxu0 0.0
    %818 = vmatpush1.msra.mxu0 %v617
    %819 = vmatprep.subr.mxu0 0.0
    %820 = vmatpush1.msra.mxu0 %v618
    %821 = vmatprep.subr.mxu0 0.0
    %822 = vmatpush1.msra.mxu0 %v619
    %823 = vmatprep.subr.mxu0 0.0
    %824 = vmatpush1.msra.mxu0 %v620
    %825 = vmatprep.subr.mxu0 0.0
    %826 = vmatpush1.msra.mxu0 %v621
    %827 = vmatprep.subr.mxu0 0.0
    %828 = vmatpush1.msra.mxu0 %v622
    %829 = vmatprep.subr.mxu0 0.0
    %830 = vmatpush1.msra.mxu0 %v623
    %831 = vmatprep.subr.mxu0 0.0
    %832 = vmatpush1.msra.mxu0 %v624
    %833 = vmatprep.subr.mxu0 0.0
    %834 = vmatpush1.msra.mxu0 %v625
    %835 = vmatprep.subr.mxu0 0.0
    %836 = vmatpush1.msra.mxu0 %v626
    %837 = vmatprep.subr.mxu0 0.0
    %838 = vmatpush1.msra.mxu0 %v627
    %839 = vmatprep.subr.mxu0 0.0
    %840 = vmatpush1.msra.mxu0 %v628
    %841 = vmatprep.subr.mxu0 0.0
    %842 = vmatpush1.msra.mxu0 %v629
    %843 = vmatprep.subr.mxu0 0.0
    %844 = vmatpush1.msra.mxu0 %v630
    %845 = vmatprep.subr.mxu0 0.0
    %846 = vmatpush1.msra.mxu0 %v631
    %847 = vmatprep.subr.mxu0 0.0
    %848 = vmatpush1.msra.mxu0 %v632
    %849 = vmatprep.mubr.f32.mxu0 %v508
    %850 = vmatmul.mubr.f32.gmra.mrb[0].mxu0 %v507
    %v851 = vpop.f32.mrb[0].mxu0
    %v852 = vadd.f32 %v707, %v851
    %v853 = vpop.f32.mrb[0].mxu0
    %854 = vmatprep.mubr.f32.mxu0 %v512
    %855 = vmatmul.mubr.f32.gmra.mrb[0].mxu0 %v511
    %v856 = vpop.f32.mrb[0].mxu0
    %v857 = vadd.f32 %v712, %v856
    %v858 = vpop.f32.mrb[0].mxu0
    %859 = vmatprep.mubr.f32.mxu0 %v516
    %860 = vmatmul.mubr.f32.gmra.mrb[0].mxu0 %v515
    %v861 = vpop.f32.mrb[0].mxu0
    %v862 = vadd.f32 %v717, %v861
    %v863 = vpop.f32.mrb[0].mxu0
    %864 = vmatprep.mubr.f32.mxu0 %v520
    %865 = vmatmul.mubr.f32.gmra.mrb[0].mxu0 %v519
    %v866 = vpop.f32.mrb[0].mxu0
    %v867 = vadd.f32 %v722, %v866
    %v868 = vpop.f32.mrb[0].mxu0
    %869 = vmatprep.mubr.f32.mxu0 %v524
    %870 = vmatmul.mubr.f32.gmra.mrb[0].mxu0 %v523
    %v871 = vpop.f32.mrb[0].mxu0
    %v872 = vadd.f32 %v727, %v871
    %v873 = vpop.f32.mrb[0].mxu0
    %874 = vmatprep.mubr.f32.mxu0 %v528
    %875 = vmatmul.mubr.f32.gmra.mrb[0].mxu0 %v527
    %v876 = vpop.f32.mrb[0].mxu0
    %v877 = vadd.f32 %v732, %v876
    %v878 = vpop.f32.mrb[0].mxu0
    %879 = vmatprep.mubr.f32.mxu0 %v532
    %880 = vmatmul.mubr.f32.gmra.mrb[0].mxu0 %v531
    %v881 = vpop.f32.mrb[0].mxu0
    %v882 = vadd.f32 %v737, %v881
    %v883 = vpop.f32.mrb[0].mxu0
    %884 = vmatprep.mubr.f32.mxu0 %v536
    %885 = vmatmul.mubr.f32.gmra.mrb[0].mxu0 %v535
    %v886 = vpop.f32.mrb[0].mxu0
    %v887 = vadd.f32 %v742, %v886
    %v888 = vpop.f32.mrb[0].mxu0
    %889 = vmatprep.mubr.f32.mxu0 %v540
    %890 = vmatmul.mubr.f32.gmra.mrb[0].mxu0 %v539
    %v891 = vpop.f32.mrb[0].mxu0
    %v892 = vadd.f32 %v747, %v891
    %v893 = vpop.f32.mrb[0].mxu0
    %894 = vmatprep.mubr.f32.mxu0 %v544
    %895 = vmatmul.mubr.f32.gmra.mrb[0].mxu0 %v543
    %v896 = vpop.f32.mrb[0].mxu0
    %v897 = vadd.f32 %v752, %v896
    %v898 = vpop.f32.mrb[0].mxu0
    %899 = vmatprep.mubr.f32.mxu0 %v548
    %900 = vmatmul.mubr.f32.gmra.mrb[0].mxu0 %v547
    %v901 = vpop.f32.mrb[0].mxu0
    %v902 = vadd.f32 %v757, %v901
    %v903 = vpop.f32.mrb[0].mxu0
    %904 = vmatprep.mubr.f32.mxu0 %v552
    %905 = vmatmul.mubr.f32.gmra.mrb[0].mxu0 %v551
    %v906 = vpop.f32.mrb[0].mxu0
    %v907 = vadd.f32 %v762, %v906
    %v908 = vpop.f32.mrb[0].mxu0
    %909 = vmatprep.mubr.f32.mxu0 %v556
    %910 = vmatmul.mubr.f32.gmra.mrb[0].mxu0 %v555
    %v911 = vpop.f32.mrb[0].mxu0
    %v912 = vadd.f32 %v767, %v911
    %v913 = vpop.f32.mrb[0].mxu0
    %914 = vmatprep.mubr.f32.mxu0 %v560
    %915 = vmatmul.mubr.f32.gmra.mrb[0].mxu0 %v559
    %v916 = vpop.f32.mrb[0].mxu0
    %v917 = vadd.f32 %v772, %v916
    %v918 = vpop.f32.mrb[0].mxu0
    %919 = vmatprep.mubr.f32.mxu0 %v564
    %920 = vmatmul.mubr.f32.gmra.mrb[0].mxu0 %v563
    %v921 = vpop.f32.mrb[0].mxu0
    %v922 = vadd.f32 %v777, %v921
    %v923 = vpop.f32.mrb[0].mxu0
    %924 = vmatprep.mubr.f32.mxu0 %v568
    %925 = vmatmul.mubr.f32.gmra.mrb[0].mxu0 %v567
    %v926 = vpop.f32.mrb[0].mxu0
    %v927 = vadd.f32 %v782, %v926
    %v928 = vpop.f32.mrb[0].mxu0
    %929 = vdwg.mxu0
    %930 = vst [vmem:[%s12] sm:$0xff] %v852
    %931 = vst [vmem:[%s12 + $0x8] sm:$0xff] %v857
    %932 = vst [vmem:[%s12 + $0x10] sm:$0xff] %v862
    %933 = vst [vmem:[%s12 + $0x18] sm:$0xff] %v867
    %934 = vst [vmem:[%s12 + $0x20] sm:$0xff] %v872
    %935 = vst [vmem:[%s12 + $0x28] sm:$0xff] %v877
    %936 = vst [vmem:[%s12 + $0x30] sm:$0xff] %v882
    %937 = vst [vmem:[%s12 + $0x38] sm:$0xff] %v887
    %938 = vst [vmem:[%s12 + $0x40] sm:$0xff] %v892
    %939 = vst [vmem:[%s12 + $0x48] sm:$0xff] %v897
    %940 = vst [vmem:[%s12 + $0x50] sm:$0xff] %v902
    %941 = vst [vmem:[%s12 + $0x58] sm:$0xff] %v907
    %942 = vst [vmem:[%s12 + $0x60] sm:$0xff] %v912
    %943 = vst [vmem:[%s12 + $0x68] sm:$0xff] %v917
    %944 = vst [vmem:[%s12 + $0x70] sm:$0xff] %v922
    %945 = vst [vmem:[%s12 + $0x78] sm:$0xff] %v927
    %v946 = vld [vmem:[%s2] sm:$0xff]
    %v947 = vld [vmem:[%s2 + $0x8] sm:$0xff]
    %v948 = vld [vmem:[%s2 + $0x10] sm:$0xff]
    %v949 = vld [vmem:[%s2 + $0x18] sm:$0xff]
    %v950 = vld [vmem:[%s2 + $0x20] sm:$0xff]
    %v951 = vld [vmem:[%s2 + $0x28] sm:$0xff]
    %v952 = vld [vmem:[%s2 + $0x30] sm:$0xff]
    %v953 = vld [vmem:[%s2 + $0x38] sm:$0xff]
    %v954 = vld [vmem:[%s2 + $0x40] sm:$0xff]
    %v955 = vld [vmem:[%s2 + $0x48] sm:$0xff]
    %v956 = vld [vmem:[%s2 + $0x50] sm:$0xff]
    %v957 = vld [vmem:[%s2 + $0x58] sm:$0xff]
    %v958 = vld [vmem:[%s2 + $0x60] sm:$0xff]
    %v959 = vld [vmem:[%s2 + $0x68] sm:$0xff]
    %v960 = vld [vmem:[%s2 + $0x70] sm:$0xff]
    %v961 = vld [vmem:[%s2 + $0x78] sm:$0xff]
    %v962 = vmul.f32 %v852, 0.5
    %v963 = vmul.f32 %v857, 0.5
    %v964 = vmul.f32 %v862, 0.5
    %v965 = vmul.f32 %v867, 0.5
    %v966 = vmul.f32 %v872, 0.5
    %v967 = vmul.f32 %v877, 0.5
    %v968 = vmul.f32 %v882, 0.5
    %v969 = vmul.f32 %v887, 0.5
    %v970 = vmul.f32 %v892, 0.5
    %v971 = vmul.f32 %v897, 0.5
    %v972 = vmul.f32 %v902, 0.5
    %v973 = vmul.f32 %v907, 0.5
    %v974 = vmul.f32 %v912, 0.5
    %v975 = vmul.f32 %v917, 0.5
    %v976 = vmul.f32 %v922, 0.5
    %v977 = vmul.f32 %v927, 0.5
    %v978 = vmul.f32 %v962, 1.442695
    %v979 = vpow.pop %v978
    %v980 = vmul.f32 %v963, 1.442695
    %v981 = vpow.pop %v980
    %v982 = vmul.f32 %v964, 1.442695
    %v983 = vpow.pop %v982
    %v984 = vmul.f32 %v965, 1.442695
    %v985 = vpow.pop %v984
    %v986 = vmul.f32 %v966, 1.442695
    %v987 = vpow.pop %v986
    %v988 = vmul.f32 %v967, 1.442695
    %v989 = vpow.pop %v988
    %v990 = vmul.f32 %v968, 1.442695
    %v991 = vpow.pop %v990
    %v992 = vmul.f32 %v969, 1.442695
    %v993 = vpow.pop %v992
    %v994 = vmul.f32 %v970, 1.442695
    %v995 = vpow.pop %v994
    %v996 = vmul.f32 %v971, 1.442695
    %v997 = vpow.pop %v996
    %v998 = vmul.f32 %v972, 1.442695
    %v999 = vpow.pop %v998
    %v1000 = vmul.f32 %v973, 1.442695
    %v1001 = vpow.pop %v1000
    %v1002 = vmul.f32 %v974, 1.442695
    %v1003 = vpow.pop %v1002
    %v1004 = vmul.f32 %v975, 1.442695
    %v1005 = vpow.pop %v1004
    %v1006 = vmul.f32 %v976, 1.442695
    %v1007 = vpow.pop %v1006
    %v1008 = vmul.f32 %v977, 1.442695
    %v1009 = vpow.pop %v1008
    %1026 = vrot.lane.b32.xlu0 %v979, 112
    %v1027 = vpop.permute.xlu0 %1026
    %1028 = vrot.lane.b32.xlu0 %v981, 112
    %v1029 = vpop.permute.xlu0 %1028
    %1030 = vrot.lane.b32.xlu0 %v983, 112
    %v1031 = vpop.permute.xlu0 %1030
    %1032 = vrot.lane.b32.xlu0 %v985, 112
    %v1033 = vpop.permute.xlu0 %1032
    %1034 = vrot.lane.b32.xlu0 %v987, 112
    %v1035 = vpop.permute.xlu0 %1034
    %1036 = vrot.lane.b32.xlu0 %v989, 112
    %v1037 = vpop.permute.xlu0 %1036
    %1038 = vrot.lane.b32.xlu0 %v991, 112
    %v1039 = vpop.permute.xlu0 %1038
    %1040 = vrot.lane.b32.xlu0 %v993, 112
    %v1041 = vpop.permute.xlu0 %1040
    %1042 = vrot.lane.b32.xlu0 %v995, 112
    %v1043 = vpop.permute.xlu0 %1042
    %1044 = vrot.lane.b32.xlu0 %v997, 112
    %v1045 = vpop.permute.xlu0 %1044
    %1046 = vrot.lane.b32.xlu0 %v999, 112
    %v1047 = vpop.permute.xlu0 %1046
    %1048 = vrot.lane.b32.xlu0 %v1001, 112
    %v1049 = vpop.permute.xlu0 %1048
    %1050 = vrot.lane.b32.xlu0 %v1003, 112
    %v1051 = vpop.permute.xlu0 %1050
    %1052 = vrot.lane.b32.xlu0 %v1005, 112
    %v1053 = vpop.permute.xlu0 %1052
    %1054 = vrot.lane.b32.xlu0 %v1007, 112
    %v1055 = vpop.permute.xlu0 %1054
    %1056 = vrot.lane.b32.xlu0 %v1009, 112
    %v1057 = vpop.permute.xlu0 %1056
    %v1074 = vmul.f32 %v946, %v1027
    %v1075 = vmul.f32 %v947, %v1029
    %v1076 = vmul.f32 %v948, %v1031
    %v1077 = vmul.f32 %v949, %v1033
    %v1078 = vmul.f32 %v950, %v1035
    %v1079 = vmul.f32 %v951, %v1037
    %v1080 = vmul.f32 %v952, %v1039
    %v1081 = vmul.f32 %v953, %v1041
    %v1082 = vmul.f32 %v954, %v1043
    %v1083 = vmul.f32 %v955, %v1045
    %v1084 = vmul.f32 %v956, %v1047
    %v1085 = vmul.f32 %v957, %v1049
    %v1086 = vmul.f32 %v958, %v1051
    %v1087 = vmul.f32 %v959, %v1053
    %v1088 = vmul.f32 %v960, %v1055
    %v1089 = vmul.f32 %v961, %v1057
    %v1090 = vadd.f32 %v852, %v1074
    %v1091 = vadd.f32 %v857, %v1075
    %v1092 = vadd.f32 %v862, %v1076
    %v1093 = vadd.f32 %v867, %v1077
    %v1094 = vadd.f32 %v872, %v1078
    %v1095 = vadd.f32 %v877, %v1079
    %v1096 = vadd.f32 %v882, %v1080
    %v1097 = vadd.f32 %v887, %v1081
    %v1098 = vadd.f32 %v892, %v1082
    %v1099 = vadd.f32 %v897, %v1083
    %v1100 = vadd.f32 %v902, %v1084
    %v1101 = vadd.f32 %v907, %v1085
    %v1102 = vadd.f32 %v912, %v1086
    %v1103 = vadd.f32 %v917, %v1087
    %v1104 = vadd.f32 %v922, %v1088
    %v1105 = vadd.f32 %v927, %v1089
    %1106 = vst [vmem:[#allocation2] sm:$0xff] 0.0
    %1107 = vst [vmem:[#allocation2 + $0x8] sm:$0xff] 0.0
    %1108 = vst [vmem:[#allocation2 + $0x10] sm:$0xff] 0.0
    %1109 = vst [vmem:[#allocation2 + $0x18] sm:$0xff] 0.0
    %1110 = vst [vmem:[#allocation2 + $0x20] sm:$0xff] 0.0
    %1111 = vst [vmem:[#allocation2 + $0x28] sm:$0xff] 0.0
    %1112 = vst [vmem:[#allocation2 + $0x30] sm:$0xff] 0.0
    %1113 = vst [vmem:[#allocation2 + $0x38] sm:$0xff] 0.0
    %1114 = vst [vmem:[#allocation2 + $0x40] sm:$0xff] 0.0
    %1115 = vst [vmem:[#allocation2 + $0x48] sm:$0xff] 0.0
    %1116 = vst [vmem:[#allocation2 + $0x50] sm:$0xff] 0.0
    %1117 = vst [vmem:[#allocation2 + $0x58] sm:$0xff] 0.0
    %1118 = vst [vmem:[#allocation2 + $0x60] sm:$0xff] 0.0
    %1119 = vst [vmem:[#allocation2 + $0x68] sm:$0xff] 0.0
    %1120 = vst [vmem:[#allocation2 + $0x70] sm:$0xff] 0.0
    %1121 = vst [vmem:[#allocation2 + $0x78] sm:$0xff] 0.0
    %vm1122 = vcmask 130048
    %1123 = vst.msk [vmem:[#allocation2] sm:$0xff] %vm1122, %v1090
    %1124 = vst.msk [vmem:[#allocation2 + $0x8] sm:$0xff] %vm1122, %v1091
    %1125 = vst.msk [vmem:[#allocation2 + $0x10] sm:$0xff] %vm1122, %v1092
    %1126 = vst.msk [vmem:[#allocation2 + $0x18] sm:$0xff] %vm1122, %v1093
    %1127 = vst.msk [vmem:[#allocation2 + $0x20] sm:$0xff] %vm1122, %v1094
    %1128 = vst.msk [vmem:[#allocation2 + $0x28] sm:$0xff] %vm1122, %v1095
    %1129 = vst.msk [vmem:[#allocation2 + $0x30] sm:$0xff] %vm1122, %v1096
    %1130 = vst.msk [vmem:[#allocation2 + $0x38] sm:$0xff] %vm1122, %v1097
    %1131 = vst.msk [vmem:[#allocation2 + $0x40] sm:$0xff] %vm1122, %v1098
    %1132 = vst.msk [vmem:[#allocation2 + $0x48] sm:$0xff] %vm1122, %v1099
    %1133 = vst.msk [vmem:[#allocation2 + $0x50] sm:$0xff] %vm1122, %v1100
    %1134 = vst.msk [vmem:[#allocation2 + $0x58] sm:$0xff] %vm1122, %v1101
    %1135 = vst.msk [vmem:[#allocation2 + $0x60] sm:$0xff] %vm1122, %v1102
    %1136 = vst.msk [vmem:[#allocation2 + $0x68] sm:$0xff] %vm1122, %v1103
    %1137 = vst.msk [vmem:[#allocation2 + $0x70] sm:$0xff] %vm1122, %v1104
    %1138 = vst.msk [vmem:[#allocation2 + $0x78] sm:$0xff] %vm1122, %v1105
    %v1139 = vld [vmem:[%s1] sm:$0xff]
    %v1140 = vld [vmem:[%s1 + $0x8] sm:$0xff]
    %v1141 = vld [vmem:[%s1 + $0x10] sm:$0xff]
    %v1142 = vld [vmem:[%s1 + $0x18] sm:$0xff]
    %v1143 = vld [vmem:[%s1 + $0x20] sm:$0xff]
    %v1144 = vld [vmem:[%s1 + $0x28] sm:$0xff]
    %v1145 = vld [vmem:[%s1 + $0x30] sm:$0xff]
    %v1146 = vld [vmem:[%s1 + $0x38] sm:$0xff]
    %v1147 = vld [vmem:[%s1 + $0x40] sm:$0xff]
    %v1148 = vld [vmem:[%s1 + $0x48] sm:$0xff]
    %v1149 = vld [vmem:[%s1 + $0x50] sm:$0xff]
    %v1150 = vld [vmem:[%s1 + $0x58] sm:$0xff]
    %v1151 = vld [vmem:[%s1 + $0x60] sm:$0xff]
    %v1152 = vld [vmem:[%s1 + $0x68] sm:$0xff]
    %v1153 = vld [vmem:[%s1 + $0x70] sm:$0xff]
    %v1154 = vld [vmem:[%s1 + $0x78] sm:$0xff]
    %1171 = vrot.lane.b32.xlu0 %v1139, 16
    %v1172 = vpop.permute.xlu0 %1171
    %1173 = vrot.lane.b32.xlu0 %v1140, 16
    %v1174 = vpop.permute.xlu0 %1173
    %1175 = vrot.lane.b32.xlu0 %v1141, 16
    %v1176 = vpop.permute.xlu0 %1175
    %1177 = vrot.lane.b32.xlu0 %v1142, 16
    %v1178 = vpop.permute.xlu0 %1177
    %1179 = vrot.lane.b32.xlu0 %v1143, 16
    %v1180 = vpop.permute.xlu0 %1179
    %1181 = vrot.lane.b32.xlu0 %v1144, 16
    %v1182 = vpop.permute.xlu0 %1181
    %1183 = vrot.lane.b32.xlu0 %v1145, 16
    %v1184 = vpop.permute.xlu0 %1183
    %1185 = vrot.lane.b32.xlu0 %v1146, 16
    %v1186 = vpop.permute.xlu0 %1185
    %1187 = vrot.lane.b32.xlu0 %v1147, 16
    %v1188 = vpop.permute.xlu0 %1187
    %1189 = vrot.lane.b32.xlu0 %v1148, 16
    %v1190 = vpop.permute.xlu0 %1189
    %1191 = vrot.lane.b32.xlu0 %v1149, 16
    %v1192 = vpop.permute.xlu0 %1191
    %1193 = vrot.lane.b32.xlu0 %v1150, 16
    %v1194 = vpop.permute.xlu0 %1193
    %1195 = vrot.lane.b32.xlu0 %v1151, 16
    %v1196 = vpop.permute.xlu0 %1195
    %1197 = vrot.lane.b32.xlu0 %v1152, 16
    %v1198 = vpop.permute.xlu0 %1197
    %1199 = vrot.lane.b32.xlu0 %v1153, 16
    %v1200 = vpop.permute.xlu0 %1199
    %1201 = vrot.lane.b32.xlu0 %v1154, 16
    %v1202 = vpop.permute.xlu0 %1201
    %vm1219 = vcmask 539776
    %1220 = vst.msk [vmem:[#allocation2] sm:$0xff] %vm1219, %v1172
    %1221 = vst.msk [vmem:[#allocation2 + $0x8] sm:$0xff] %vm1219, %v1174
    %1222 = vst.msk [vmem:[#allocation2 + $0x10] sm:$0xff] %vm1219, %v1176
    %1223 = vst.msk [vmem:[#allocation2 + $0x18] sm:$0xff] %vm1219, %v1178
    %1224 = vst.msk [vmem:[#allocation2 + $0x20] sm:$0xff] %vm1219, %v1180
    %1225 = vst.msk [vmem:[#allocation2 + $0x28] sm:$0xff] %vm1219, %v1182
    %1226 = vst.msk [vmem:[#allocation2 + $0x30] sm:$0xff] %vm1219, %v1184
    %1227 = vst.msk [vmem:[#allocation2 + $0x38] sm:$0xff] %vm1219, %v1186
    %1228 = vst.msk [vmem:[#allocation2 + $0x40] sm:$0xff] %vm1219, %v1188
    %1229 = vst.msk [vmem:[#allocation2 + $0x48] sm:$0xff] %vm1219, %v1190
    %1230 = vst.msk [vmem:[#allocation2 + $0x50] sm:$0xff] %vm1219, %v1192
    %1231 = vst.msk [vmem:[#allocation2 + $0x58] sm:$0xff] %vm1219, %v1194
    %1232 = vst.msk [vmem:[#allocation2 + $0x60] sm:$0xff] %vm1219, %v1196
    %1233 = vst.msk [vmem:[#allocation2 + $0x68] sm:$0xff] %vm1219, %v1198
    %1234 = vst.msk [vmem:[#allocation2 + $0x70] sm:$0xff] %vm1219, %v1200
    %1235 = vst.msk [vmem:[#allocation2 + $0x78] sm:$0xff] %vm1219, %v1202
    %v1236 = vld [vmem:[#allocation2] sm:$0xff]
    %v1237 = vld [vmem:[#allocation2 + $0x8] sm:$0xff]
    %v1238 = vld [vmem:[#allocation2 + $0x10] sm:$0xff]
    %v1239 = vld [vmem:[#allocation2 + $0x18] sm:$0xff]
    %v1240 = vld [vmem:[#allocation2 + $0x20] sm:$0xff]
    %v1241 = vld [vmem:[#allocation2 + $0x28] sm:$0xff]
    %v1242 = vld [vmem:[#allocation2 + $0x30] sm:$0xff]
    %v1243 = vld [vmem:[#allocation2 + $0x38] sm:$0xff]
    %v1244 = vld [vmem:[#allocation2 + $0x40] sm:$0xff]
    %v1245 = vld [vmem:[#allocation2 + $0x48] sm:$0xff]
    %v1246 = vld [vmem:[#allocation2 + $0x50] sm:$0xff]
    %v1247 = vld [vmem:[#allocation2 + $0x58] sm:$0xff]
    %v1248 = vld [vmem:[#allocation2 + $0x60] sm:$0xff]
    %v1249 = vld [vmem:[#allocation2 + $0x68] sm:$0xff]
    %v1250 = vld [vmem:[#allocation2 + $0x70] sm:$0xff]
    %v1251 = vld [vmem:[#allocation2 + $0x78] sm:$0xff]
    %v1252 = vld [vmem:[#allocation5] sm:$0xff]
    %v1253 = vld [vmem:[#allocation5 + $0x8] sm:$0xff]
    %v1254 = vld [vmem:[#allocation5 + $0x10] sm:$0xff]
    %v1255 = vld [vmem:[#allocation5 + $0x18] sm:$0xff]
    %v1256 = vld [vmem:[#allocation5 + $0x20] sm:$0xff]
    %v1257 = vld [vmem:[#allocation5 + $0x28] sm:$0xff]
    %v1258 = vld [vmem:[#allocation5 + $0x30] sm:$0xff]
    %v1259 = vld [vmem:[#allocation5 + $0x38] sm:$0xff]
    %v1260 = vld [vmem:[#allocation5 + $0x40] sm:$0xff]
    %v1261 = vld [vmem:[#allocation5 + $0x48] sm:$0xff]
    %v1262 = vld [vmem:[#allocation5 + $0x50] sm:$0xff]
    %v1263 = vld [vmem:[#allocation5 + $0x58] sm:$0xff]
    %v1264 = vld [vmem:[#allocation5 + $0x60] sm:$0xff]
    %v1265 = vld [vmem:[#allocation5 + $0x68] sm:$0xff]
    %v1266 = vld [vmem:[#allocation5 + $0x70] sm:$0xff]
    %v1267 = vld [vmem:[#allocation5 + $0x78] sm:$0xff]
    %v1268 = vld [vmem:[#allocation5 + $0x80] sm:$0xff]
    %v1269 = vld [vmem:[#allocation5 + $0x88] sm:$0xff]
    %v1270 = vld [vmem:[#allocation5 + $0x90] sm:$0xff]
    %v1271 = vld [vmem:[#allocation5 + $0x98] sm:$0xff]
    %v1272 = vld [vmem:[#allocation5 + $0xa0] sm:$0xff]
    %v1273 = vld [vmem:[#allocation5 + $0xa8] sm:$0xff]
    %v1274 = vld [vmem:[#allocation5 + $0xb0] sm:$0xff]
    %v1275 = vld [vmem:[#allocation5 + $0xb8] sm:$0xff]
    %v1276 = vld [vmem:[#allocation5 + $0xc0] sm:$0xff]
    %v1277 = vld [vmem:[#allocation5 + $0xc8] sm:$0xff]
    %v1278 = vld [vmem:[#allocation5 + $0xd0] sm:$0xff]
    %v1279 = vld [vmem:[#allocation5 + $0xd8] sm:$0xff]
    %v1280 = vld [vmem:[#allocation5 + $0xe0] sm:$0xff]
    %v1281 = vld [vmem:[#allocation5 + $0xe8] sm:$0xff]
    %v1282 = vld [vmem:[#allocation5 + $0xf0] sm:$0xff]
    %v1283 = vld [vmem:[#allocation5 + $0xf8] sm:$0xff]
    %v1284 = vld [vmem:[#allocation5 + $0x100] sm:$0xff]
    %v1285 = vld [vmem:[#allocation5 + $0x108] sm:$0xff]
    %v1286 = vld [vmem:[#allocation5 + $0x110] sm:$0xff]
    %v1287 = vld [vmem:[#allocation5 + $0x118] sm:$0xff]
    %v1288 = vld [vmem:[#allocation5 + $0x120] sm:$0xff]
    %v1289 = vld [vmem:[#allocation5 + $0x128] sm:$0xff]
    %v1290 = vld [vmem:[#allocation5 + $0x130] sm:$0xff]
    %v1291 = vld [vmem:[#allocation5 + $0x138] sm:$0xff]
    %v1292 = vld [vmem:[#allocation5 + $0x140] sm:$0xff]
    %v1293 = vld [vmem:[#allocation5 + $0x148] sm:$0xff]
    %v1294 = vld [vmem:[#allocation5 + $0x150] sm:$0xff]
    %v1295 = vld [vmem:[#allocation5 + $0x158] sm:$0xff]
    %v1296 = vld [vmem:[#allocation5 + $0x160] sm:$0xff]
    %v1297 = vld [vmem:[#allocation5 + $0x168] sm:$0xff]
    %v1298 = vld [vmem:[#allocation5 + $0x170] sm:$0xff]
    %v1299 = vld [vmem:[#allocation5 + $0x178] sm:$0xff]
    %v1300 = vld [vmem:[#allocation5 + $0x180] sm:$0xff]
    %v1301 = vld [vmem:[#allocation5 + $0x188] sm:$0xff]
    %v1302 = vld [vmem:[#allocation5 + $0x190] sm:$0xff]
    %v1303 = vld [vmem:[#allocation5 + $0x198] sm:$0xff]
    %v1304 = vld [vmem:[#allocation5 + $0x1a0] sm:$0xff]
    %v1305 = vld [vmem:[#allocation5 + $0x1a8] sm:$0xff]
    %v1306 = vld [vmem:[#allocation5 + $0x1b0] sm:$0xff]
    %v1307 = vld [vmem:[#allocation5 + $0x1b8] sm:$0xff]
    %v1308 = vld [vmem:[#allocation5 + $0x1c0] sm:$0xff]
    %v1309 = vld [vmem:[#allocation5 + $0x1c8] sm:$0xff]
    %v1310 = vld [vmem:[#allocation5 + $0x1d0] sm:$0xff]
    %v1311 = vld [vmem:[#allocation5 + $0x1d8] sm:$0xff]
    %v1312 = vld [vmem:[#allocation5 + $0x1e0] sm:$0xff]
    %v1313 = vld [vmem:[#allocation5 + $0x1e8] sm:$0xff]
    %v1314 = vld [vmem:[#allocation5 + $0x1f0] sm:$0xff]
    %v1315 = vld [vmem:[#allocation5 + $0x1f8] sm:$0xff]
    %v1316 = vld [vmem:[%s8] sm:$0xf]
    %v1318 = vlaneseq
    %v1319 = vshrl.u32 %v1318, 7
    %v1320 = vsub.s32 0, %v1319
    %v1321 = vrot.slane %v1316, %v1320
    %v1322 = vlaneseq
    %v1323 = vshrl.u32 %v1322, 7
    %v1324 = vsub.s32 1, %v1323
    %v1325 = vrot.slane %v1316, %v1324
    %v1326 = vlaneseq
    %v1327 = vshrl.u32 %v1326, 7
    %v1328 = vsub.s32 2, %v1327
    %v1329 = vrot.slane %v1316, %v1328
    %v1330 = vlaneseq
    %v1331 = vshrl.u32 %v1330, 7
    %v1332 = vsub.s32 3, %v1331
    %v1333 = vrot.slane %v1316, %v1332
    %1338 = vmatprep.subr.mxu0 %v1253
    %1339 = vmatpush1.msra.mxu0 %v1252
    %1340 = vmatprep.subr.mxu0 %v1257
    %1341 = vmatpush1.msra.mxu0 %v1256
    %1342 = vmatprep.subr.mxu0 %v1261
    %1343 = vmatpush1.msra.mxu0 %v1260
    %1344 = vmatprep.subr.mxu0 %v1265
    %1345 = vmatpush1.msra.mxu0 %v1264
    %1346 = vmatprep.subr.mxu0 %v1269
    %1347 = vmatpush1.msra.mxu0 %v1268
    %1348 = vmatprep.subr.mxu0 %v1273
    %1349 = vmatpush1.msra.mxu0 %v1272
    %1350 = vmatprep.subr.mxu0 %v1277
    %1351 = vmatpush1.msra.mxu0 %v1276
    %1352 = vmatprep.subr.mxu0 %v1281
    %1353 = vmatpush1.msra.mxu0 %v1280
    %1354 = vmatprep.subr.mxu0 %v1285
    %1355 = vmatpush1.msra.mxu0 %v1284
    %1356 = vmatprep.subr.mxu0 %v1289
    %1357 = vmatpush1.msra.mxu0 %v1288
    %1358 = vmatprep.subr.mxu0 %v1293
    %1359 = vmatpush1.msra.mxu0 %v1292
    %1360 = vmatprep.subr.mxu0 %v1297
    %1361 = vmatpush1.msra.mxu0 %v1296
    %1362 = vmatprep.subr.mxu0 %v1301
    %1363 = vmatpush1.msra.mxu0 %v1300
    %1364 = vmatprep.subr.mxu0 %v1305
    %1365 = vmatpush1.msra.mxu0 %v1304
    %1366 = vmatprep.subr.mxu0 %v1309
    %1367 = vmatpush1.msra.mxu0 %v1308
    %1368 = vmatprep.subr.mxu0 %v1313
    %1369 = vmatpush1.msra.mxu0 %v1312
    %1370 = vmatprep.subr.mxu0 0.0
    %1371 = vmatpush1.msra.mxu0 0.0
    %1372 = vmatprep.subr.mxu0 0.0
    %1373 = vmatpush1.msra.mxu0 0.0
    %1374 = vmatprep.subr.mxu0 0.0
    %1375 = vmatpush1.msra.mxu0 0.0
    %1376 = vmatprep.subr.mxu0 0.0
    %1377 = vmatpush1.msra.mxu0 0.0
    %1378 = vmatprep.subr.mxu0 0.0
    %1379 = vmatpush1.msra.mxu0 0.0
    %1380 = vmatprep.subr.mxu0 0.0
    %1381 = vmatpush1.msra.mxu0 0.0
    %1382 = vmatprep.subr.mxu0 0.0
    %1383 = vmatpush1.msra.mxu0 0.0
    %1384 = vmatprep.subr.mxu0 0.0
    %1385 = vmatpush1.msra.mxu0 0.0
    %1386 = vmatprep.subr.mxu0 0.0
    %1387 = vmatpush1.msra.mxu0 0.0
    %1388 = vmatprep.subr.mxu0 0.0
    %1389 = vmatpush1.msra.mxu0 0.0
    %1390 = vmatprep.subr.mxu0 0.0
    %1391 = vmatpush1.msra.mxu0 0.0
    %1392 = vmatprep.subr.mxu0 0.0
    %1393 = vmatpush1.msra.mxu0 0.0
    %1394 = vmatprep.subr.mxu0 0.0
    %1395 = vmatpush1.msra.mxu0 0.0
    %1396 = vmatprep.subr.mxu0 0.0
    %1397 = vmatpush1.msra.mxu0 0.0
    %1398 = vmatprep.subr.mxu0 0.0
    %1399 = vmatpush1.msra.mxu0 0.0
    %1400 = vmatprep.subr.mxu0 0.0
    %1401 = vmatpush1.msra.mxu0 0.0
    %1402 = vmatprep.mubr.f32.mxu0 0.0
    %1403 = vmatmul.mubr.f32.gmra.mrb[0].mxu0 %v1236
    %v1404 = vpop.f32.mrb[0].mxu0
    %v1405 = vadd.f32 %v1321, %v1404
    %v1406 = vpop.f32.mrb[0].mxu0
    %v1407 = vadd.f32 %v1325, %v1406
    %1408 = vmatprep.mubr.f32.mxu0 0.0
    %1409 = vmatmul.mubr.f32.gmra.mrb[0].mxu0 %v1237
    %v1410 = vpop.f32.mrb[0].mxu0
    %v1411 = vadd.f32 %v1321, %v1410
    %v1412 = vpop.f32.mrb[0].mxu0
    %v1413 = vadd.f32 %v1325, %v1412
    %1414 = vmatprep.mubr.f32.mxu0 0.0
    %1415 = vmatmul.mubr.f32.gmra.mrb[0].mxu0 %v1238
    %v1416 = vpop.f32.mrb[0].mxu0
    %v1417 = vadd.f32 %v1321, %v1416
    %v1418 = vpop.f32.mrb[0].mxu0
    %v1419 = vadd.f32 %v1325, %v1418
    %1420 = vmatprep.mubr.f32.mxu0 0.0
    %1421 = vmatmul.mubr.f32.gmra.mrb[0].mxu0 %v1239
    %v1422 = vpop.f32.mrb[0].mxu0
    %v1423 = vadd.f32 %v1321, %v1422
    %v1424 = vpop.f32.mrb[0].mxu0
    %v1425 = vadd.f32 %v1325, %v1424
    %1426 = vmatprep.mubr.f32.mxu0 0.0
    %1427 = vmatmul.mubr.f32.gmra.mrb[0].mxu0 %v1240
    %v1428 = vpop.f32.mrb[0].mxu0
    %v1429 = vadd.f32 %v1321, %v1428
    %v1430 = vpop.f32.mrb[0].mxu0
    %v1431 = vadd.f32 %v1325, %v1430
    %1432 = vmatprep.mubr.f32.mxu0 0.0
    %1433 = vmatmul.mubr.f32.gmra.mrb[0].mxu0 %v1241
    %v1434 = vpop.f32.mrb[0].mxu0
    %v1435 = vadd.f32 %v1321, %v1434
    %v1436 = vpop.f32.mrb[0].mxu0
    %v1437 = vadd.f32 %v1325, %v1436
    %1438 = vmatprep.mubr.f32.mxu0 0.0
    %1439 = vmatmul.mubr.f32.gmra.mrb[0].mxu0 %v1242
    %v1440 = vpop.f32.mrb[0].mxu0
    %v1441 = vadd.f32 %v1321, %v1440
    %v1442 = vpop.f32.mrb[0].mxu0
    %v1443 = vadd.f32 %v1325, %v1442
    %1444 = vmatprep.mubr.f32.mxu0 0.0
    %1445 = vmatmul.mubr.f32.gmra.mrb[0].mxu0 %v1243
    %v1446 = vpop.f32.mrb[0].mxu0
    %v1447 = vadd.f32 %v1321, %v1446
    %v1448 = vpop.f32.mrb[0].mxu0
    %v1449 = vadd.f32 %v1325, %v1448
    %1450 = vmatprep.mubr.f32.mxu0 0.0
    %1451 = vmatmul.mubr.f32.gmra.mrb[0].mxu0 %v1244
    %v1452 = vpop.f32.mrb[0].mxu0
    %v1453 = vadd.f32 %v1321, %v1452
    %v1454 = vpop.f32.mrb[0].mxu0
    %v1455 = vadd.f32 %v1325, %v1454
    %1456 = vmatprep.mubr.f32.mxu0 0.0
    %1457 = vmatmul.mubr.f32.gmra.mrb[0].mxu0 %v1245
    %v1458 = vpop.f32.mrb[0].mxu0
    %v1459 = vadd.f32 %v1321, %v1458
    %v1460 = vpop.f32.mrb[0].mxu0
    %v1461 = vadd.f32 %v1325, %v1460
    %1462 = vmatprep.mubr.f32.mxu0 0.0
    %1463 = vmatmul.mubr.f32.gmra.mrb[0].mxu0 %v1246
    %v1464 = vpop.f32.mrb[0].mxu0
    %v1465 = vadd.f32 %v1321, %v1464
    %v1466 = vpop.f32.mrb[0].mxu0
    %v1467 = vadd.f32 %v1325, %v1466
    %1468 = vmatprep.mubr.f32.mxu0 0.0
    %1469 = vmatmul.mubr.f32.gmra.mrb[0].mxu0 %v1247
    %v1470 = vpop.f32.mrb[0].mxu0
    %v1471 = vadd.f32 %v1321, %v1470
    %v1472 = vpop.f32.mrb[0].mxu0
    %v1473 = vadd.f32 %v1325, %v1472
    %1474 = vmatprep.mubr.f32.mxu0 0.0
    %1475 = vmatmul.mubr.f32.gmra.mrb[0].mxu0 %v1248
    %v1476 = vpop.f32.mrb[0].mxu0
    %v1477 = vadd.f32 %v1321, %v1476
    %v1478 = vpop.f32.mrb[0].mxu0
    %v1479 = vadd.f32 %v1325, %v1478
    %1480 = vmatprep.mubr.f32.mxu0 0.0
    %1481 = vmatmul.mubr.f32.gmra.mrb[0].mxu0 %v1249
    %v1482 = vpop.f32.mrb[0].mxu0
    %v1483 = vadd.f32 %v1321, %v1482
    %v1484 = vpop.f32.mrb[0].mxu0
    %v1485 = vadd.f32 %v1325, %v1484
    %1486 = vmatprep.mubr.f32.mxu0 0.0
    %1487 = vmatmul.mubr.f32.gmra.mrb[0].mxu0 %v1250
    %v1488 = vpop.f32.mrb[0].mxu0
    %v1489 = vadd.f32 %v1321, %v1488
    %v1490 = vpop.f32.mrb[0].mxu0
    %v1491 = vadd.f32 %v1325, %v1490
    %1492 = vmatprep.mubr.f32.mxu0 0.0
    %1493 = vmatmul.mubr.f32.gmra.mrb[0].mxu0 %v1251
    %v1494 = vpop.f32.mrb[0].mxu0
    %v1495 = vadd.f32 %v1321, %v1494
    %v1496 = vpop.f32.mrb[0].mxu0
    %v1497 = vadd.f32 %v1325, %v1496
    %1498 = vdwg.mxu0
    %1499 = vmatprep.subr.mxu0 %v1255
    %1500 = vmatpush1.msra.mxu0 %v1254
    %1501 = vmatprep.subr.mxu0 %v1259
    %1502 = vmatpush1.msra.mxu0 %v1258
    %1503 = vmatprep.subr.mxu0 %v1263
    %1504 = vmatpush1.msra.mxu0 %v1262
    %1505 = vmatprep.subr.mxu0 %v1267
    %1506 = vmatpush1.msra.mxu0 %v1266
    %1507 = vmatprep.subr.mxu0 %v1271
    %1508 = vmatpush1.msra.mxu0 %v1270
    %1509 = vmatprep.subr.mxu0 %v1275
    %1510 = vmatpush1.msra.mxu0 %v1274
    %1511 = vmatprep.subr.mxu0 %v1279
    %1512 = vmatpush1.msra.mxu0 %v1278
    %1513 = vmatprep.subr.mxu0 %v1283
    %1514 = vmatpush1.msra.mxu0 %v1282
    %1515 = vmatprep.subr.mxu0 %v1287
    %1516 = vmatpush1.msra.mxu0 %v1286
    %1517 = vmatprep.subr.mxu0 %v1291
    %1518 = vmatpush1.msra.mxu0 %v1290
    %1519 = vmatprep.subr.mxu0 %v1295
    %1520 = vmatpush1.msra.mxu0 %v1294
    %1521 = vmatprep.subr.mxu0 %v1299
    %1522 = vmatpush1.msra.mxu0 %v1298
    %1523 = vmatprep.subr.mxu0 %v1303
    %1524 = vmatpush1.msra.mxu0 %v1302
    %1525 = vmatprep.subr.mxu0 %v1307
    %1526 = vmatpush1.msra.mxu0 %v1306
    %1527 = vmatprep.subr.mxu0 %v1311
    %1528 = vmatpush1.msra.mxu0 %v1310
    %1529 = vmatprep.subr.mxu0 %v1315
    %1530 = vmatpush1.msra.mxu0 %v1314
    %1531 = vmatprep.subr.mxu0 0.0
    %1532 = vmatpush1.msra.mxu0 0.0
    %1533 = vmatprep.subr.mxu0 0.0
    %1534 = vmatpush1.msra.mxu0 0.0
    %1535 = vmatprep.subr.mxu0 0.0
    %1536 = vmatpush1.msra.mxu0 0.0
    %1537 = vmatprep.subr.mxu0 0.0
    %1538 = vmatpush1.msra.mxu0 0.0
    %1539 = vmatprep.subr.mxu0 0.0
    %1540 = vmatpush1.msra.mxu0 0.0
    %1541 = vmatprep.subr.mxu0 0.0
    %1542 = vmatpush1.msra.mxu0 0.0
    %1543 = vmatprep.subr.mxu0 0.0
    %1544 = vmatpush1.msra.mxu0 0.0
    %1545 = vmatprep.subr.mxu0 0.0
    %1546 = vmatpush1.msra.mxu0 0.0
    %1547 = vmatprep.subr.mxu0 0.0
    %1548 = vmatpush1.msra.mxu0 0.0
    %1549 = vmatprep.subr.mxu0 0.0
    %1550 = vmatpush1.msra.mxu0 0.0
    %1551 = vmatprep.subr.mxu0 0.0
    %1552 = vmatpush1.msra.mxu0 0.0
    %1553 = vmatprep.subr.mxu0 0.0
    %1554 = vmatpush1.msra.mxu0 0.0
    %1555 = vmatprep.subr.mxu0 0.0
    %1556 = vmatpush1.msra.mxu0 0.0
    %1557 = vmatprep.subr.mxu0 0.0
    %1558 = vmatpush1.msra.mxu0 0.0
    %1559 = vmatprep.subr.mxu0 0.0
    %1560 = vmatpush1.msra.mxu0 0.0
    %1561 = vmatprep.subr.mxu0 0.0
    %1562 = vmatpush1.msra.mxu0 0.0
    %1563 = vmatprep.mubr.f32.mxu0 0.0
    %1564 = vmatmul.mubr.f32.gmra.mrb[0].mxu0 %v1236
    %v1565 = vpop.f32.mrb[0].mxu0
    %v1566 = vadd.f32 %v1329, %v1565
    %v1567 = vpop.f32.mrb[0].mxu0
    %v1568 = vadd.f32 %v1333, %v1567
    %1569 = vmatprep.mubr.f32.mxu0 0.0
    %1570 = vmatmul.mubr.f32.gmra.mrb[0].mxu0 %v1237
    %v1571 = vpop.f32.mrb[0].mxu0
    %v1572 = vadd.f32 %v1329, %v1571
    %v1573 = vpop.f32.mrb[0].mxu0
    %v1574 = vadd.f32 %v1333, %v1573
    %1575 = vmatprep.mubr.f32.mxu0 0.0
    %1576 = vmatmul.mubr.f32.gmra.mrb[0].mxu0 %v1238
    %v1577 = vpop.f32.mrb[0].mxu0
    %v1578 = vadd.f32 %v1329, %v1577
    %v1579 = vpop.f32.mrb[0].mxu0
    %v1580 = vadd.f32 %v1333, %v1579
    %1581 = vmatprep.mubr.f32.mxu0 0.0
    %1582 = vmatmul.mubr.f32.gmra.mrb[0].mxu0 %v1239
    %v1583 = vpop.f32.mrb[0].mxu0
    %v1584 = vadd.f32 %v1329, %v1583
    %v1585 = vpop.f32.mrb[0].mxu0
    %v1586 = vadd.f32 %v1333, %v1585
    %1587 = vmatprep.mubr.f32.mxu0 0.0
    %1588 = vmatmul.mubr.f32.gmra.mrb[0].mxu0 %v1240
    %v1589 = vpop.f32.mrb[0].mxu0
    %v1590 = vadd.f32 %v1329, %v1589
    %v1591 = vpop.f32.mrb[0].mxu0
    %v1592 = vadd.f32 %v1333, %v1591
    %1593 = vmatprep.mubr.f32.mxu0 0.0
    %1594 = vmatmul.mubr.f32.gmra.mrb[0].mxu0 %v1241
    %v1595 = vpop.f32.mrb[0].mxu0
    %v1596 = vadd.f32 %v1329, %v1595
    %v1597 = vpop.f32.mrb[0].mxu0
    %v1598 = vadd.f32 %v1333, %v1597
    %1599 = vmatprep.mubr.f32.mxu0 0.0
    %1600 = vmatmul.mubr.f32.gmra.mrb[0].mxu0 %v1242
    %v1601 = vpop.f32.mrb[0].mxu0
    %v1602 = vadd.f32 %v1329, %v1601
    %v1603 = vpop.f32.mrb[0].mxu0
    %v1604 = vadd.f32 %v1333, %v1603
    %1605 = vmatprep.mubr.f32.mxu0 0.0
    %1606 = vmatmul.mubr.f32.gmra.mrb[0].mxu0 %v1243
    %v1607 = vpop.f32.mrb[0].mxu0
    %v1608 = vadd.f32 %v1329, %v1607
    %v1609 = vpop.f32.mrb[0].mxu0
    %v1610 = vadd.f32 %v1333, %v1609
    %1611 = vmatprep.mubr.f32.mxu0 0.0
    %1612 = vmatmul.mubr.f32.gmra.mrb[0].mxu0 %v1244
    %v1613 = vpop.f32.mrb[0].mxu0
    %v1614 = vadd.f32 %v1329, %v1613
    %v1615 = vpop.f32.mrb[0].mxu0
    %v1616 = vadd.f32 %v1333, %v1615
    %1617 = vmatprep.mubr.f32.mxu0 0.0
    %1618 = vmatmul.mubr.f32.gmra.mrb[0].mxu0 %v1245
    %v1619 = vpop.f32.mrb[0].mxu0
    %v1620 = vadd.f32 %v1329, %v1619
    %v1621 = vpop.f32.mrb[0].mxu0
    %v1622 = vadd.f32 %v1333, %v1621
    %1623 = vmatprep.mubr.f32.mxu0 0.0
    %1624 = vmatmul.mubr.f32.gmra.mrb[0].mxu0 %v1246
    %v1625 = vpop.f32.mrb[0].mxu0
    %v1626 = vadd.f32 %v1329, %v1625
    %v1627 = vpop.f32.mrb[0].mxu0
    %v1628 = vadd.f32 %v1333, %v1627
    %1629 = vmatprep.mubr.f32.mxu0 0.0
    %1630 = vmatmul.mubr.f32.gmra.mrb[0].mxu0 %v1247
    %v1631 = vpop.f32.mrb[0].mxu0
    %v1632 = vadd.f32 %v1329, %v1631
    %v1633 = vpop.f32.mrb[0].mxu0
    %v1634 = vadd.f32 %v1333, %v1633
    %1635 = vmatprep.mubr.f32.mxu0 0.0
    %1636 = vmatmul.mubr.f32.gmra.mrb[0].mxu0 %v1248
    %v1637 = vpop.f32.mrb[0].mxu0
    %v1638 = vadd.f32 %v1329, %v1637
    %v1639 = vpop.f32.mrb[0].mxu0
    %v1640 = vadd.f32 %v1333, %v1639
    %1641 = vmatprep.mubr.f32.mxu0 0.0
    %1642 = vmatmul.mubr.f32.gmra.mrb[0].mxu0 %v1249
    %v1643 = vpop.f32.mrb[0].mxu0
    %v1644 = vadd.f32 %v1329, %v1643
    %v1645 = vpop.f32.mrb[0].mxu0
    %v1646 = vadd.f32 %v1333, %v1645
    %1647 = vmatprep.mubr.f32.mxu0 0.0
    %1648 = vmatmul.mubr.f32.gmra.mrb[0].mxu0 %v1250
    %v1649 = vpop.f32.mrb[0].mxu0
    %v1650 = vadd.f32 %v1329, %v1649
    %v1651 = vpop.f32.mrb[0].mxu0
    %v1652 = vadd.f32 %v1333, %v1651
    %1653 = vmatprep.mubr.f32.mxu0 0.0
    %1654 = vmatmul.mubr.f32.gmra.mrb[0].mxu0 %v1251
    %v1655 = vpop.f32.mrb[0].mxu0
    %v1656 = vadd.f32 %v1329, %v1655
    %v1657 = vpop.f32.mrb[0].mxu0
    %v1658 = vadd.f32 %v1333, %v1657
    %1659 = vdwg.mxu0
    %v1660 = vmax.f32 %v1405, 0.0
    %v1661 = vmax.f32 %v1407, 0.0
    %v1662 = vmax.f32 %v1566, 0.0
    %v1663 = vmax.f32 %v1568, 0.0
    %v1664 = vmax.f32 %v1411, 0.0
    %v1665 = vmax.f32 %v1413, 0.0
    %v1666 = vmax.f32 %v1572, 0.0
    %v1667 = vmax.f32 %v1574, 0.0
    %v1668 = vmax.f32 %v1417, 0.0
    %v1669 = vmax.f32 %v1419, 0.0
    %v1670 = vmax.f32 %v1578, 0.0
    %v1671 = vmax.f32 %v1580, 0.0
    %v1672 = vmax.f32 %v1423, 0.0
    %v1673 = vmax.f32 %v1425, 0.0
    %v1674 = vmax.f32 %v1584, 0.0
    %v1675 = vmax.f32 %v1586, 0.0
    %v1676 = vmax.f32 %v1429, 0.0
    %v1677 = vmax.f32 %v1431, 0.0
    %v1678 = vmax.f32 %v1590, 0.0
    %v1679 = vmax.f32 %v1592, 0.0
    %v1680 = vmax.f32 %v1435, 0.0
    %v1681 = vmax.f32 %v1437, 0.0
    %v1682 = vmax.f32 %v1596, 0.0
    %v1683 = vmax.f32 %v1598, 0.0
    %v1684 = vmax.f32 %v1441, 0.0
    %v1685 = vmax.f32 %v1443, 0.0
    %v1686 = vmax.f32 %v1602, 0.0
    %v1687 = vmax.f32 %v1604, 0.0
    %v1688 = vmax.f32 %v1447, 0.0
    %v1689 = vmax.f32 %v1449, 0.0
    %v1690 = vmax.f32 %v1608, 0.0
    %v1691 = vmax.f32 %v1610, 0.0
    %v1692 = vmax.f32 %v1453, 0.0
    %v1693 = vmax.f32 %v1455, 0.0
    %v1694 = vmax.f32 %v1614, 0.0
    %v1695 = vmax.f32 %v1616, 0.0
    %v1696 = vmax.f32 %v1459, 0.0
    %v1697 = vmax.f32 %v1461, 0.0
    %v1698 = vmax.f32 %v1620, 0.0
    %v1699 = vmax.f32 %v1622, 0.0
    %v1700 = vmax.f32 %v1465, 0.0
    %v1701 = vmax.f32 %v1467, 0.0
    %v1702 = vmax.f32 %v1626, 0.0
    %v1703 = vmax.f32 %v1628, 0.0
    %v1704 = vmax.f32 %v1471, 0.0
    %v1705 = vmax.f32 %v1473, 0.0
    %v1706 = vmax.f32 %v1632, 0.0
    %v1707 = vmax.f32 %v1634, 0.0
    %v1708 = vmax.f32 %v1477, 0.0
    %v1709 = vmax.f32 %v1479, 0.0
    %v1710 = vmax.f32 %v1638, 0.0
    %v1711 = vmax.f32 %v1640, 0.0
    %v1712 = vmax.f32 %v1483, 0.0
    %v1713 = vmax.f32 %v1485, 0.0
    %v1714 = vmax.f32 %v1644, 0.0
    %v1715 = vmax.f32 %v1646, 0.0
    %v1716 = vmax.f32 %v1489, 0.0
    %v1717 = vmax.f32 %v1491, 0.0
    %v1718 = vmax.f32 %v1650, 0.0
    %v1719 = vmax.f32 %v1652, 0.0
    %v1720 = vmax.f32 %v1495, 0.0
    %v1721 = vmax.f32 %v1497, 0.0
    %v1722 = vmax.f32 %v1656, 0.0
    %v1723 = vmax.f32 %v1658, 0.0
    %v1724 = vld [vmem:[#allocation7] sm:$0xff]
    %v1725 = vld [vmem:[#allocation7 + $0x8] sm:$0xff]
    %v1726 = vld [vmem:[#allocation7 + $0x10] sm:$0xff]
    %v1727 = vld [vmem:[#allocation7 + $0x18] sm:$0xff]
    %v1728 = vld [vmem:[#allocation7 + $0x20] sm:$0xff]
    %v1729 = vld [vmem:[#allocation7 + $0x28] sm:$0xff]
    %v1730 = vld [vmem:[#allocation7 + $0x30] sm:$0xff]
    %v1731 = vld [vmem:[#allocation7 + $0x38] sm:$0xff]
    %v1732 = vld [vmem:[#allocation7 + $0x40] sm:$0xff]
    %v1733 = vld [vmem:[#allocation7 + $0x48] sm:$0xff]
    %v1734 = vld [vmem:[#allocation7 + $0x50] sm:$0xff]
    %v1735 = vld [vmem:[#allocation7 + $0x58] sm:$0xff]
    %v1736 = vld [vmem:[#allocation7 + $0x60] sm:$0xff]
    %v1737 = vld [vmem:[#allocation7 + $0x68] sm:$0xff]
    %v1738 = vld [vmem:[#allocation7 + $0x70] sm:$0xff]
    %v1739 = vld [vmem:[#allocation7 + $0x78] sm:$0xff]
    %v1740 = vld [vmem:[#allocation7 + $0x80] sm:$0xff]
    %v1741 = vld [vmem:[#allocation7 + $0x88] sm:$0xff]
    %v1742 = vld [vmem:[#allocation7 + $0x90] sm:$0xff]
    %v1743 = vld [vmem:[#allocation7 + $0x98] sm:$0xff]
    %v1744 = vld [vmem:[#allocation7 + $0xa0] sm:$0xff]
    %v1745 = vld [vmem:[#allocation7 + $0xa8] sm:$0xff]
    %v1746 = vld [vmem:[#allocation7 + $0xb0] sm:$0xff]
    %v1747 = vld [vmem:[#allocation7 + $0xb8] sm:$0xff]
    %v1748 = vld [vmem:[#allocation7 + $0xc0] sm:$0xff]
    %v1749 = vld [vmem:[#allocation7 + $0xc8] sm:$0xff]
    %v1750 = vld [vmem:[#allocation7 + $0xd0] sm:$0xff]
    %v1751 = vld [vmem:[#allocation7 + $0xd8] sm:$0xff]
    %v1752 = vld [vmem:[#allocation7 + $0xe0] sm:$0xff]
    %v1753 = vld [vmem:[#allocation7 + $0xe8] sm:$0xff]
    %v1754 = vld [vmem:[#allocation7 + $0xf0] sm:$0xff]
    %v1755 = vld [vmem:[#allocation7 + $0xf8] sm:$0xff]
    %v1756 = vld [vmem:[#allocation7 + $0x100] sm:$0xff]
    %v1757 = vld [vmem:[#allocation7 + $0x108] sm:$0xff]
    %v1758 = vld [vmem:[#allocation7 + $0x110] sm:$0xff]
    %v1759 = vld [vmem:[#allocation7 + $0x118] sm:$0xff]
    %v1760 = vld [vmem:[#allocation7 + $0x120] sm:$0xff]
    %v1761 = vld [vmem:[#allocation7 + $0x128] sm:$0xff]
    %v1762 = vld [vmem:[#allocation7 + $0x130] sm:$0xff]
    %v1763 = vld [vmem:[#allocation7 + $0x138] sm:$0xff]
    %v1764 = vld [vmem:[#allocation7 + $0x140] sm:$0xff]
    %v1765 = vld [vmem:[#allocation7 + $0x148] sm:$0xff]
    %v1766 = vld [vmem:[#allocation7 + $0x150] sm:$0xff]
    %v1767 = vld [vmem:[#allocation7 + $0x158] sm:$0xff]
    %v1768 = vld [vmem:[#allocation7 + $0x160] sm:$0xff]
    %v1769 = vld [vmem:[#allocation7 + $0x168] sm:$0xff]
    %v1770 = vld [vmem:[#allocation7 + $0x170] sm:$0xff]
    %v1771 = vld [vmem:[#allocation7 + $0x178] sm:$0xff]
    %v1772 = vld [vmem:[#allocation7 + $0x180] sm:$0xff]
    %v1773 = vld [vmem:[#allocation7 + $0x188] sm:$0xff]
    %v1774 = vld [vmem:[#allocation7 + $0x190] sm:$0xff]
    %v1775 = vld [vmem:[#allocation7 + $0x198] sm:$0xff]
    %v1776 = vld [vmem:[#allocation7 + $0x1a0] sm:$0xff]
    %v1777 = vld [vmem:[#allocation7 + $0x1a8] sm:$0xff]
    %v1778 = vld [vmem:[#allocation7 + $0x1b0] sm:$0xff]
    %v1779 = vld [vmem:[#allocation7 + $0x1b8] sm:$0xff]
    %v1780 = vld [vmem:[#allocation7 + $0x1c0] sm:$0xff]
    %v1781 = vld [vmem:[#allocation7 + $0x1c8] sm:$0xff]
    %v1782 = vld [vmem:[#allocation7 + $0x1d0] sm:$0xff]
    %v1783 = vld [vmem:[#allocation7 + $0x1d8] sm:$0xff]
    %v1784 = vld [vmem:[#allocation7 + $0x1e0] sm:$0xff]
    %v1785 = vld [vmem:[#allocation7 + $0x1e8] sm:$0xff]
    %v1786 = vld [vmem:[#allocation7 + $0x1f0] sm:$0xff]
    %v1787 = vld [vmem:[#allocation7 + $0x1f8] sm:$0xff]
    %v1788 = vld [vmem:[%s10] sm:$0x1]
    %v1790 = vlaneseq
    %v1791 = vshrl.u32 %v1790, 7
    %v1792 = vsub.s32 0, %v1791
    %v1793 = vrot.slane %v1788, %v1792
    %1795 = vmatprep.subr.mxu0 0.0
    %1796 = vmatpush1.msra.mxu0 %v1724
    %1797 = vmatprep.subr.mxu0 0.0
    %1798 = vmatpush1.msra.mxu0 %v1725
    %1799 = vmatprep.subr.mxu0 0.0
    %1800 = vmatpush1.msra.mxu0 %v1726
    %1801 = vmatprep.subr.mxu0 0.0
    %1802 = vmatpush1.msra.mxu0 %v1727
    %1803 = vmatprep.subr.mxu0 0.0
    %1804 = vmatpush1.msra.mxu0 %v1728
    %1805 = vmatprep.subr.mxu0 0.0
    %1806 = vmatpush1.msra.mxu0 %v1729
    %1807 = vmatprep.subr.mxu0 0.0
    %1808 = vmatpush1.msra.mxu0 %v1730
    %1809 = vmatprep.subr.mxu0 0.0
    %1810 = vmatpush1.msra.mxu0 %v1731
    %1811 = vmatprep.subr.mxu0 0.0
    %1812 = vmatpush1.msra.mxu0 %v1732
    %1813 = vmatprep.subr.mxu0 0.0
    %1814 = vmatpush1.msra.mxu0 %v1733
    %1815 = vmatprep.subr.mxu0 0.0
    %1816 = vmatpush1.msra.mxu0 %v1734
    %1817 = vmatprep.subr.mxu0 0.0
    %1818 = vmatpush1.msra.mxu0 %v1735
    %1819 = vmatprep.subr.mxu0 0.0
    %1820 = vmatpush1.msra.mxu0 %v1736
    %1821 = vmatprep.subr.mxu0 0.0
    %1822 = vmatpush1.msra.mxu0 %v1737
    %1823 = vmatprep.subr.mxu0 0.0
    %1824 = vmatpush1.msra.mxu0 %v1738
    %1825 = vmatprep.subr.mxu0 0.0
    %1826 = vmatpush1.msra.mxu0 %v1739
    %1827 = vmatprep.subr.mxu0 0.0
    %1828 = vmatpush1.msra.mxu0 %v1740
    %1829 = vmatprep.subr.mxu0 0.0
    %1830 = vmatpush1.msra.mxu0 %v1741
    %1831 = vmatprep.subr.mxu0 0.0
    %1832 = vmatpush1.msra.mxu0 %v1742
    %1833 = vmatprep.subr.mxu0 0.0
    %1834 = vmatpush1.msra.mxu0 %v1743
    %1835 = vmatprep.subr.mxu0 0.0
    %1836 = vmatpush1.msra.mxu0 %v1744
    %1837 = vmatprep.subr.mxu0 0.0
    %1838 = vmatpush1.msra.mxu0 %v1745
    %1839 = vmatprep.subr.mxu0 0.0
    %1840 = vmatpush1.msra.mxu0 %v1746
    %1841 = vmatprep.subr.mxu0 0.0
    %1842 = vmatpush1.msra.mxu0 %v1747
    %1843 = vmatprep.subr.mxu0 0.0
    %1844 = vmatpush1.msra.mxu0 %v1748
    %1845 = vmatprep.subr.mxu0 0.0
    %1846 = vmatpush1.msra.mxu0 %v1749
    %1847 = vmatprep.subr.mxu0 0.0
    %1848 = vmatpush1.msra.mxu0 %v1750
    %1849 = vmatprep.subr.mxu0 0.0
    %1850 = vmatpush1.msra.mxu0 %v1751
    %1851 = vmatprep.subr.mxu0 0.0
    %1852 = vmatpush1.msra.mxu0 %v1752
    %1853 = vmatprep.subr.mxu0 0.0
    %1854 = vmatpush1.msra.mxu0 %v1753
    %1855 = vmatprep.subr.mxu0 0.0
    %1856 = vmatpush1.msra.mxu0 %v1754
    %1857 = vmatprep.subr.mxu0 0.0
    %1858 = vmatpush1.msra.mxu0 %v1755
    %1859 = vmatprep.mubr.f32.mxu0 %v1661
    %1860 = vmatmul.mubr.f32.gmra.mrb[0].mxu0 %v1660
    %v1861 = vpop.f32.mrb[0].mxu0
    %v1862 = vadd.f32 %v1793, %v1861
    %v1863 = vpop.f32.mrb[0].mxu0
    %1864 = vmatprep.mubr.f32.mxu0 %v1665
    %1865 = vmatmul.mubr.f32.gmra.mrb[0].mxu0 %v1664
    %v1866 = vpop.f32.mrb[0].mxu0
    %v1867 = vadd.f32 %v1793, %v1866
    %v1868 = vpop.f32.mrb[0].mxu0
    %1869 = vmatprep.mubr.f32.mxu0 %v1669
    %1870 = vmatmul.mubr.f32.gmra.mrb[0].mxu0 %v1668
    %v1871 = vpop.f32.mrb[0].mxu0
    %v1872 = vadd.f32 %v1793, %v1871
    %v1873 = vpop.f32.mrb[0].mxu0
    %1874 = vmatprep.mubr.f32.mxu0 %v1673
    %1875 = vmatmul.mubr.f32.gmra.mrb[0].mxu0 %v1672
    %v1876 = vpop.f32.mrb[0].mxu0
    %v1877 = vadd.f32 %v1793, %v1876
    %v1878 = vpop.f32.mrb[0].mxu0
    %1879 = vmatprep.mubr.f32.mxu0 %v1677
    %1880 = vmatmul.mubr.f32.gmra.mrb[0].mxu0 %v1676
    %v1881 = vpop.f32.mrb[0].mxu0
    %v1882 = vadd.f32 %v1793, %v1881
    %v1883 = vpop.f32.mrb[0].mxu0
    %1884 = vmatprep.mubr.f32.mxu0 %v1681
    %1885 = vmatmul.mubr.f32.gmra.mrb[0].mxu0 %v1680
    %v1886 = vpop.f32.mrb[0].mxu0
    %v1887 = vadd.f32 %v1793, %v1886
    %v1888 = vpop.f32.mrb[0].mxu0
    %1889 = vmatprep.mubr.f32.mxu0 %v1685
    %1890 = vmatmul.mubr.f32.gmra.mrb[0].mxu0 %v1684
    %v1891 = vpop.f32.mrb[0].mxu0
    %v1892 = vadd.f32 %v1793, %v1891
    %v1893 = vpop.f32.mrb[0].mxu0
    %1894 = vmatprep.mubr.f32.mxu0 %v1689
    %1895 = vmatmul.mubr.f32.gmra.mrb[0].mxu0 %v1688
    %v1896 = vpop.f32.mrb[0].mxu0
    %v1897 = vadd.f32 %v1793, %v1896
    %v1898 = vpop.f32.mrb[0].mxu0
    %1899 = vmatprep.mubr.f32.mxu0 %v1693
    %1900 = vmatmul.mubr.f32.gmra.mrb[0].mxu0 %v1692
    %v1901 = vpop.f32.mrb[0].mxu0
    %v1902 = vadd.f32 %v1793, %v1901
    %v1903 = vpop.f32.mrb[0].mxu0
    %1904 = vmatprep.mubr.f32.mxu0 %v1697
    %1905 = vmatmul.mubr.f32.gmra.mrb[0].mxu0 %v1696
    %v1906 = vpop.f32.mrb[0].mxu0
    %v1907 = vadd.f32 %v1793, %v1906
    %v1908 = vpop.f32.mrb[0].mxu0
    %1909 = vmatprep.mubr.f32.mxu0 %v1701
    %1910 = vmatmul.mubr.f32.gmra.mrb[0].mxu0 %v1700
    %v1911 = vpop.f32.mrb[0].mxu0
    %v1912 = vadd.f32 %v1793, %v1911
    %v1913 = vpop.f32.mrb[0].mxu0
    %1914 = vmatprep.mubr.f32.mxu0 %v1705
    %1915 = vmatmul.mubr.f32.gmra.mrb[0].mxu0 %v1704
    %v1916 = vpop.f32.mrb[0].mxu0
    %v1917 = vadd.f32 %v1793, %v1916
    %v1918 = vpop.f32.mrb[0].mxu0
    %1919 = vmatprep.mubr.f32.mxu0 %v1709
    %1920 = vmatmul.mubr.f32.gmra.mrb[0].mxu0 %v1708
    %v1921 = vpop.f32.mrb[0].mxu0
    %v1922 = vadd.f32 %v1793, %v1921
    %v1923 = vpop.f32.mrb[0].mxu0
    %1924 = vmatprep.mubr.f32.mxu0 %v1713
    %1925 = vmatmul.mubr.f32.gmra.mrb[0].mxu0 %v1712
    %v1926 = vpop.f32.mrb[0].mxu0
    %v1927 = vadd.f32 %v1793, %v1926
    %v1928 = vpop.f32.mrb[0].mxu0
    %1929 = vmatprep.mubr.f32.mxu0 %v1717
    %1930 = vmatmul.mubr.f32.gmra.mrb[0].mxu0 %v1716
    %v1931 = vpop.f32.mrb[0].mxu0
    %v1932 = vadd.f32 %v1793, %v1931
    %v1933 = vpop.f32.mrb[0].mxu0
    %1934 = vmatprep.mubr.f32.mxu0 %v1721
    %1935 = vmatmul.mubr.f32.gmra.mrb[0].mxu0 %v1720
    %v1936 = vpop.f32.mrb[0].mxu0
    %v1937 = vadd.f32 %v1793, %v1936
    %v1938 = vpop.f32.mrb[0].mxu0
    %1939 = vdwg.mxu0
    %1940 = vmatprep.subr.mxu0 0.0
    %1941 = vmatpush1.msra.mxu0 %v1756
    %1942 = vmatprep.subr.mxu0 0.0
    %1943 = vmatpush1.msra.mxu0 %v1757
    %1944 = vmatprep.subr.mxu0 0.0
    %1945 = vmatpush1.msra.mxu0 %v1758
    %1946 = vmatprep.subr.mxu0 0.0
    %1947 = vmatpush1.msra.mxu0 %v1759
    %1948 = vmatprep.subr.mxu0 0.0
    %1949 = vmatpush1.msra.mxu0 %v1760
    %1950 = vmatprep.subr.mxu0 0.0
    %1951 = vmatpush1.msra.mxu0 %v1761
    %1952 = vmatprep.subr.mxu0 0.0
    %1953 = vmatpush1.msra.mxu0 %v1762
    %1954 = vmatprep.subr.mxu0 0.0
    %1955 = vmatpush1.msra.mxu0 %v1763
    %1956 = vmatprep.subr.mxu0 0.0
    %1957 = vmatpush1.msra.mxu0 %v1764
    %1958 = vmatprep.subr.mxu0 0.0
    %1959 = vmatpush1.msra.mxu0 %v1765
    %1960 = vmatprep.subr.mxu0 0.0
    %1961 = vmatpush1.msra.mxu0 %v1766
    %1962 = vmatprep.subr.mxu0 0.0
    %1963 = vmatpush1.msra.mxu0 %v1767
    %1964 = vmatprep.subr.mxu0 0.0
    %1965 = vmatpush1.msra.mxu0 %v1768
    %1966 = vmatprep.subr.mxu0 0.0
    %1967 = vmatpush1.msra.mxu0 %v1769
    %1968 = vmatprep.subr.mxu0 0.0
    %1969 = vmatpush1.msra.mxu0 %v1770
    %1970 = vmatprep.subr.mxu0 0.0
    %1971 = vmatpush1.msra.mxu0 %v1771
    %1972 = vmatprep.subr.mxu0 0.0
    %1973 = vmatpush1.msra.mxu0 %v1772
    %1974 = vmatprep.subr.mxu0 0.0
    %1975 = vmatpush1.msra.mxu0 %v1773
    %1976 = vmatprep.subr.mxu0 0.0
    %1977 = vmatpush1.msra.mxu0 %v1774
    %1978 = vmatprep.subr.mxu0 0.0
    %1979 = vmatpush1.msra.mxu0 %v1775
    %1980 = vmatprep.subr.mxu0 0.0
    %1981 = vmatpush1.msra.mxu0 %v1776
    %1982 = vmatprep.subr.mxu0 0.0
    %1983 = vmatpush1.msra.mxu0 %v1777
    %1984 = vmatprep.subr.mxu0 0.0
    %1985 = vmatpush1.msra.mxu0 %v1778
    %1986 = vmatprep.subr.mxu0 0.0
    %1987 = vmatpush1.msra.mxu0 %v1779
    %1988 = vmatprep.subr.mxu0 0.0
    %1989 = vmatpush1.msra.mxu0 %v1780
    %1990 = vmatprep.subr.mxu0 0.0
    %1991 = vmatpush1.msra.mxu0 %v1781
    %1992 = vmatprep.subr.mxu0 0.0
    %1993 = vmatpush1.msra.mxu0 %v1782
    %1994 = vmatprep.subr.mxu0 0.0
    %1995 = vmatpush1.msra.mxu0 %v1783
    %1996 = vmatprep.subr.mxu0 0.0
    %1997 = vmatpush1.msra.mxu0 %v1784
    %1998 = vmatprep.subr.mxu0 0.0
    %1999 = vmatpush1.msra.mxu0 %v1785
    %2000 = vmatprep.subr.mxu0 0.0
    %2001 = vmatpush1.msra.mxu0 %v1786
    %2002 = vmatprep.subr.mxu0 0.0
    %2003 = vmatpush1.msra.mxu0 %v1787
    %2004 = vmatprep.mubr.f32.mxu0 %v1663
    %2005 = vmatmul.mubr.f32.gmra.mrb[0].mxu0 %v1662
    %v2006 = vpop.f32.mrb[0].mxu0
    %v2007 = vadd.f32 %v1862, %v2006
    %v2008 = vpop.f32.mrb[0].mxu0
    %2009 = vmatprep.mubr.f32.mxu0 %v1667
    %2010 = vmatmul.mubr.f32.gmra.mrb[0].mxu0 %v1666
    %v2011 = vpop.f32.mrb[0].mxu0
    %v2012 = vadd.f32 %v1867, %v2011
    %v2013 = vpop.f32.mrb[0].mxu0
    %2014 = vmatprep.mubr.f32.mxu0 %v1671
    %2015 = vmatmul.mubr.f32.gmra.mrb[0].mxu0 %v1670
    %v2016 = vpop.f32.mrb[0].mxu0
    %v2017 = vadd.f32 %v1872, %v2016
    %v2018 = vpop.f32.mrb[0].mxu0
    %2019 = vmatprep.mubr.f32.mxu0 %v1675
    %2020 = vmatmul.mubr.f32.gmra.mrb[0].mxu0 %v1674
    %v2021 = vpop.f32.mrb[0].mxu0
    %v2022 = vadd.f32 %v1877, %v2021
    %v2023 = vpop.f32.mrb[0].mxu0
    %2024 = vmatprep.mubr.f32.mxu0 %v1679
    %2025 = vmatmul.mubr.f32.gmra.mrb[0].mxu0 %v1678
    %v2026 = vpop.f32.mrb[0].mxu0
    %v2027 = vadd.f32 %v1882, %v2026
    %v2028 = vpop.f32.mrb[0].mxu0
    %2029 = vmatprep.mubr.f32.mxu0 %v1683
    %2030 = vmatmul.mubr.f32.gmra.mrb[0].mxu0 %v1682
    %v2031 = vpop.f32.mrb[0].mxu0
    %v2032 = vadd.f32 %v1887, %v2031
    %v2033 = vpop.f32.mrb[0].mxu0
    %2034 = vmatprep.mubr.f32.mxu0 %v1687
    %2035 = vmatmul.mubr.f32.gmra.mrb[0].mxu0 %v1686
    %v2036 = vpop.f32.mrb[0].mxu0
    %v2037 = vadd.f32 %v1892, %v2036
    %v2038 = vpop.f32.mrb[0].mxu0
    %2039 = vmatprep.mubr.f32.mxu0 %v1691
    %2040 = vmatmul.mubr.f32.gmra.mrb[0].mxu0 %v1690
    %v2041 = vpop.f32.mrb[0].mxu0
    %v2042 = vadd.f32 %v1897, %v2041
    %v2043 = vpop.f32.mrb[0].mxu0
    %2044 = vmatprep.mubr.f32.mxu0 %v1695
    %2045 = vmatmul.mubr.f32.gmra.mrb[0].mxu0 %v1694
    %v2046 = vpop.f32.mrb[0].mxu0
    %v2047 = vadd.f32 %v1902, %v2046
    %v2048 = vpop.f32.mrb[0].mxu0
    %2049 = vmatprep.mubr.f32.mxu0 %v1699
    %2050 = vmatmul.mubr.f32.gmra.mrb[0].mxu0 %v1698
    %v2051 = vpop.f32.mrb[0].mxu0
    %v2052 = vadd.f32 %v1907, %v2051
    %v2053 = vpop.f32.mrb[0].mxu0
    %2054 = vmatprep.mubr.f32.mxu0 %v1703
    %2055 = vmatmul.mubr.f32.gmra.mrb[0].mxu0 %v1702
    %v2056 = vpop.f32.mrb[0].mxu0
    %v2057 = vadd.f32 %v1912, %v2056
    %v2058 = vpop.f32.mrb[0].mxu0
    %2059 = vmatprep.mubr.f32.mxu0 %v1707
    %2060 = vmatmul.mubr.f32.gmra.mrb[0].mxu0 %v1706
    %v2061 = vpop.f32.mrb[0].mxu0
    %v2062 = vadd.f32 %v1917, %v2061
    %v2063 = vpop.f32.mrb[0].mxu0
    %2064 = vmatprep.mubr.f32.mxu0 %v1711
    %2065 = vmatmul.mubr.f32.gmra.mrb[0].mxu0 %v1710
    %v2066 = vpop.f32.mrb[0].mxu0
    %v2067 = vadd.f32 %v1922, %v2066
    %v2068 = vpop.f32.mrb[0].mxu0
    %2069 = vmatprep.mubr.f32.mxu0 %v1715
    %2070 = vmatmul.mubr.f32.gmra.mrb[0].mxu0 %v1714
    %v2071 = vpop.f32.mrb[0].mxu0
    %v2072 = vadd.f32 %v1927, %v2071
    %v2073 = vpop.f32.mrb[0].mxu0
    %2074 = vmatprep.mubr.f32.mxu0 %v1719
    %2075 = vmatmul.mubr.f32.gmra.mrb[0].mxu0 %v1718
    %v2076 = vpop.f32.mrb[0].mxu0
    %v2077 = vadd.f32 %v1932, %v2076
    %v2078 = vpop.f32.mrb[0].mxu0
    %2079 = vmatprep.mubr.f32.mxu0 %v1723
    %2080 = vmatmul.mubr.f32.gmra.mrb[0].mxu0 %v1722
    %v2081 = vpop.f32.mrb[0].mxu0
    %v2082 = vadd.f32 %v1937, %v2081
    %v2083 = vpop.f32.mrb[0].mxu0
    %2084 = vdwg.mxu0
    %2085 = vst [vmem:[%s11] sm:$0xff] %v2007
    %2086 = vst [vmem:[%s11 + $0x8] sm:$0xff] %v2012
    %2087 = vst [vmem:[%s11 + $0x10] sm:$0xff] %v2017
    %2088 = vst [vmem:[%s11 + $0x18] sm:$0xff] %v2022
    %2089 = vst [vmem:[%s11 + $0x20] sm:$0xff] %v2027
    %2090 = vst [vmem:[%s11 + $0x28] sm:$0xff] %v2032
    %2091 = vst [vmem:[%s11 + $0x30] sm:$0xff] %v2037
    %2092 = vst [vmem:[%s11 + $0x38] sm:$0xff] %v2042
    %2093 = vst [vmem:[%s11 + $0x40] sm:$0xff] %v2047
    %2094 = vst [vmem:[%s11 + $0x48] sm:$0xff] %v2052
    %2095 = vst [vmem:[%s11 + $0x50] sm:$0xff] %v2057
    %2096 = vst [vmem:[%s11 + $0x58] sm:$0xff] %v2062
    %2097 = vst [vmem:[%s11 + $0x60] sm:$0xff] %v2067
    %2098 = vst [vmem:[%s11 + $0x68] sm:$0xff] %v2072
    %2099 = vst [vmem:[%s11 + $0x70] sm:$0xff] %v2077
    %2100 = vst [vmem:[%s11 + $0x78] sm:$0xff] %v2082
    // Predicated region
    $region58: #{cvae_forward.1} parent=1 // pred_check
      _
    $region59: #{cvae_forward.1} parent=1 // pred_check_branch
      %2102 = sbr.rel (0) target = $region61
    $region60: #{cvae_forward.1} parent=1 // pred_region
      _
    $region61: #{cvae_forward.1} parent=1 // pred_fallthru
      _
    // Predicated region
    $region62: #{cvae_forward.1} parent=1 // pred_check
      _
    $region63: #{cvae_forward.1} parent=1 // pred_check_branch
      %2104 = sbr.rel (0) target = $region65
    $region64: #{cvae_forward.1} parent=1 // pred_region
      _
    $region65: #{cvae_forward.1} parent=1 // pred_fallthru
      _
    // Predicated region
    $region66: #{cvae_forward.1} parent=1 // pred_check
      _
    $region67: #{cvae_forward.1} parent=1 // pred_check_branch
      %2106 = sbr.rel (0) target = $region69
    $region68: #{cvae_forward.1} parent=1 // pred_region
      _
    $region69: #{cvae_forward.1} parent=1 // pred_fallthru
      _
    // Predicated region
    $region70: #{cvae_forward.1} parent=1 // pred_check
      _
    $region71: #{cvae_forward.1} parent=1 // pred_check_branch
      %2108 = sbr.rel (0) target = $region73
    $region72: #{cvae_forward.1} parent=1 // pred_region
      _
    $region73: #{cvae_forward.1} parent=1 // pred_fallthru
      _
    %2109 = vsyncpa [#allocation4], 1
    %2110 = vsyncpa [#allocation6], 1

</llo_original>
